<compile_context>
chip_gen: v5e
topology: v5e:2x2
jax: 0.10.0
libtpu: 0.0.40
codegen_flags: <defaults>
</compile_context>

<pallas_src>
import jax
import jax.numpy as jnp
from jax.experimental import pallas as pl
from jax.experimental.pallas import tpu as pltpu


def mlp_kernel(x_ref, w1_ref, b1_ref, w2_ref, b2_ref, g_ref, beta_ref, o_ref):
    x = x_ref[...]                                            # (TM, D_in)  f32

    # fc1: bf16 MXU inputs, f32 accumulation; bias + ReLU in f32 on the VPU.
    h = jnp.dot(x.astype(jnp.bfloat16), w1_ref[...],
                preferred_element_type=jnp.float32)
    h = jnp.maximum(h + b1_ref[...], 0.0)

    # dropout1(p=0.1): inference mode -> identity.

    # fc2: bf16 MXU inputs, f32 accumulation.
    y = jnp.dot(h.astype(jnp.bfloat16), w2_ref[...],
                preferred_element_type=jnp.float32)
    y = y + b2_ref[...]

    # LayerNorm over the last (output_dim) axis, eps = torch default 1e-5.
    # Two-pass statistics (mean, then centered variance) for better numerics.
    mean = jnp.mean(y, axis=-1, keepdims=True)
    c = y - mean
    var = jnp.mean(c * c, axis=-1, keepdims=True)
    inv_std = jax.lax.rsqrt(var + 1e-5)                       # EUP
    o_ref[...] = c * inv_std * g_ref[...] + beta_ref[...]


def mlp_forward(x, w1, b1, w2, b2, gamma, beta, *, block_rows=256):
    B, d_in = x.shape
    hidden = w1.shape[1]
    d_out = w2.shape[1]

    # Weights fed to the MXU in bf16 (halves resident-weight VMEM + HBM traffic).
    w1_bf16 = w1.astype(jnp.bfloat16)
    w2_bf16 = w2.astype(jnp.bfloat16)

    # Batch tile: multiple of 8 sublanes, capped at block_rows, and chosen so
    # we keep >= 2 grid steps when B allows it (v7x megacore sharding).
    # No wrapper-side padding: the last (possibly partial) block is masked by
    # the Pallas pipeline.
    half_b = max(8, ((pl.cdiv(B, 2) + 7) // 8) * 8)
    tm = min(block_rows, half_b)
    grid = (pl.cdiv(B, tm),)

    # Weights / biases: constant index_map -> VMEM-resident across grid steps.
    resident = lambda shape: pl.BlockSpec(shape, lambda i: (0,) * len(shape))

    cost = pl.CostEstimate(
        flops=2 * B * (d_in * hidden + hidden * d_out),
        transcendentals=B,  # one rsqrt per row
        bytes_accessed=(x.size * 4 + w1_bf16.size * 2 + w2_bf16.size * 2
                        + b1.size * 4 + b2.size * 4 + gamma.size * 4
                        + beta.size * 4 + B * d_out * 4),
    )

    out = pl.pallas_call(
        mlp_kernel,
        out_shape=jax.ShapeDtypeStruct((B, d_out), jnp.float32),
        grid=grid,
        in_specs=[
            pl.BlockSpec((tm, d_in), lambda i: (i, 0)),   # x tile (pipelined)
            resident(w1_bf16.shape),
            resident(b1.shape),
            resident(w2_bf16.shape),
            resident(b2.shape),
            resident(gamma.shape),
            resident(beta.shape),
        ],
        out_specs=pl.BlockSpec((tm, d_out), lambda i: (i, 0)),
        compiler_params=pltpu.CompilerParams(
            dimension_semantics=("parallel",),
            vmem_limit_bytes=32 << 20,
        ),
        cost_estimate=cost,
    )(x, w1_bf16, b1, w2_bf16, b2, gamma, beta)

    return out


def init_params(key, input_dim, hidden_dim, output_dim):
    # Deterministic init mimicking torch.nn.Linear default (U[-1/sqrt(fan_in), +1/sqrt(fan_in)]).
    k1, k2, k3, k4 = jax.random.split(key, 4)
    bound1 = 1.0 / jnp.sqrt(input_dim)
    bound2 = 1.0 / jnp.sqrt(hidden_dim)
    w1 = jax.random.uniform(k1, (input_dim, hidden_dim), jnp.float32, -bound1, bound1)
    b1 = jax.random.uniform(k2, (1, hidden_dim), jnp.float32, -bound1, bound1)
    w2 = jax.random.uniform(k3, (hidden_dim, output_dim), jnp.float32, -bound2, bound2)
    b2 = jax.random.uniform(k4, (1, output_dim), jnp.float32, -bound2, bound2)
    gamma = jnp.ones((1, output_dim), jnp.float32)   # LayerNorm weight init
    beta = jnp.zeros((1, output_dim), jnp.float32)   # LayerNorm bias init
    return w1, b1, w2, b2, gamma, beta


if __name__ == "__main__":
    # Lane-aligned shapes (feature dims multiples of 128, batch multiple of 8).
    input_dim, hidden_dim, output_dim = 128, 256, 128
    batch = 512   # -> tm = 256, grid = (2,)

    key = jax.random.PRNGKey(0)
    kx, kp = jax.random.split(key)
    x = jax.random.normal(kx, (batch, input_dim), jnp.float32)
    params = init_params(kp, input_dim, hidden_dim, output_dim)

    out = mlp_forward(x, *params)
    jax.block_until_ready(out)

    # Pure-JAX reference mirroring the kernel's numerics (bf16 MXU inputs,
    # f32 accumulation, eval-mode dropout, torch LayerNorm eps=1e-5).
    w1, b1, w2, b2, gamma, beta = params
    h = jnp.dot(x.astype(jnp.bfloat16), w1.astype(jnp.bfloat16),
                preferred_element_type=jnp.float32) + b1
    h = jnp.maximum(h, 0.0)
    y = jnp.dot(h.astype(jnp.bfloat16), w2.astype(jnp.bfloat16),
                preferred_element_type=jnp.float32) + b2
    mu = y.mean(-1, keepdims=True)
    var = ((y - mu) ** 2).mean(-1, keepdims=True)
    ref = (y - mu) / jnp.sqrt(var + 1e-5) * gamma + beta
    assert out.shape == (batch, output_dim)
    assert jnp.allclose(out, ref, atol=1e-2, rtol=1e-2)

    print("KERNEL_OK")
</pallas_src>

<mosaic_0001>
module attributes {stable_mosaic.version = 11 : i64} {
  func.func @mlp_kernel(%arg0: i32, %arg1: memref<256x128xf32, #tpu.memory_space<vmem>>, %arg2: memref<128x256xbf16, #tpu.memory_space<vmem>>, %arg3: memref<1x256xf32, #tpu.memory_space<vmem>>, %arg4: memref<256x128xbf16, #tpu.memory_space<vmem>>, %arg5: memref<1x128xf32, #tpu.memory_space<vmem>>, %arg6: memref<1x128xf32, #tpu.memory_space<vmem>>, %arg7: memref<1x128xf32, #tpu.memory_space<vmem>>, %arg8: memref<256x128xf32, #tpu.memory_space<vmem>>) attributes {dimension_semantics = [#tpu.dimension_semantics<parallel>], iteration_bounds = array<i64: 2>, scalar_prefetch = 0 : i64, scratch_operands = 0 : i64, tpu.core_type = #tpu.core_type<tc>, window_params = [{transform_indices = @transform_0, window_bounds = array<i64: 256, 128>}, {pipeline_mode = #tpu.pipeline_mode<synchronous>, transform_indices = @transform_1, window_bounds = array<i64: 128, 256>}, {pipeline_mode = #tpu.pipeline_mode<synchronous>, transform_indices = @transform_2, window_bounds = array<i64: 1, 256>}, {pipeline_mode = #tpu.pipeline_mode<synchronous>, transform_indices = @transform_3, window_bounds = array<i64: 256, 128>}, {pipeline_mode = #tpu.pipeline_mode<synchronous>, transform_indices = @transform_4, window_bounds = array<i64: 1, 128>}, {pipeline_mode = #tpu.pipeline_mode<synchronous>, transform_indices = @transform_5, window_bounds = array<i64: 1, 128>}, {pipeline_mode = #tpu.pipeline_mode<synchronous>, transform_indices = @transform_6, window_bounds = array<i64: 1, 128>}, {transform_indices = @transform_7, window_bounds = array<i64: 256, 128>}]} {
    %c0 = arith.constant 0 : index
    %c0_0 = arith.constant 0 : index
    %0 = vector.load %arg1[%c0, %c0_0] : memref<256x128xf32, #tpu.memory_space<vmem>>, vector<256x128xf32>
    %1 = arith.truncf %0 : vector<256x128xf32> to vector<256x128xbf16>
    %c0_1 = arith.constant 0 : index
    %c0_2 = arith.constant 0 : index
    %2 = vector.load %arg2[%c0_1, %c0_2] : memref<128x256xbf16, #tpu.memory_space<vmem>>, vector<128x256xbf16>
    %cst = arith.constant dense<0.000000e+00> : vector<256x256xf32>
    %3 = tpu.matmul %1, %2, %cst {dimension_numbers = #tpu.dot_dimension_numbers<[1], [0], [0], [1], [0, 0, 1, 1], [], []>} : vector<256x128xbf16>, vector<128x256xbf16>, vector<256x256xf32> -> vector<256x256xf32>
    %c0_3 = arith.constant 0 : index
    %c0_4 = arith.constant 0 : index
    %4 = vector.load %arg3[%c0_3, %c0_4] : memref<1x256xf32, #tpu.memory_space<vmem>>, vector<1x256xf32>
    %5 = vector.broadcast %4 : vector<1x256xf32> to vector<256x256xf32>
    %6 = arith.addf %3, %5 : vector<256x256xf32>
    %cst_5 = arith.constant 0.000000e+00 : f32
    %7 = vector.broadcast %cst_5 : f32 to vector<256x256xf32>
    %8 = arith.maximumf %6, %7 : vector<256x256xf32>
    %9 = arith.truncf %8 : vector<256x256xf32> to vector<256x256xbf16>
    %c0_6 = arith.constant 0 : index
    %c0_7 = arith.constant 0 : index
    %10 = vector.load %arg4[%c0_6, %c0_7] : memref<256x128xbf16, #tpu.memory_space<vmem>>, vector<256x128xbf16>
    %cst_8 = arith.constant dense<0.000000e+00> : vector<256x128xf32>
    %11 = tpu.matmul %9, %10, %cst_8 {dimension_numbers = #tpu.dot_dimension_numbers<[1], [0], [0], [1], [0, 0, 1, 1], [], []>} : vector<256x256xbf16>, vector<256x128xbf16>, vector<256x128xf32> -> vector<256x128xf32>
    %c0_9 = arith.constant 0 : index
    %c0_10 = arith.constant 0 : index
    %12 = vector.load %arg5[%c0_9, %c0_10] : memref<1x128xf32, #tpu.memory_space<vmem>>, vector<1x128xf32>
    %13 = vector.broadcast %12 : vector<1x128xf32> to vector<256x128xf32>
    %14 = arith.addf %11, %13 : vector<256x128xf32>
    %cst_11 = arith.constant dense<0.000000e+00> : vector<256xf32>
    %15 = vector.multi_reduction <add>, %14, %cst_11 [1] : vector<256x128xf32> to vector<256xf32>
    %16 = vector.shape_cast %15 : vector<256xf32> to vector<256x1xf32>
    %cst_12 = arith.constant 1.280000e+02 : f32
    %17 = vector.broadcast %cst_12 : f32 to vector<256x1xf32>
    %18 = arith.divf %16, %17 : vector<256x1xf32>
    %19 = vector.broadcast %18 : vector<256x1xf32> to vector<256x128xf32>
    %20 = arith.subf %14, %19 : vector<256x128xf32>
    %21 = arith.mulf %20, %20 : vector<256x128xf32>
    %cst_13 = arith.constant dense<0.000000e+00> : vector<256xf32>
    %22 = vector.multi_reduction <add>, %21, %cst_13 [1] : vector<256x128xf32> to vector<256xf32>
    %23 = vector.shape_cast %22 : vector<256xf32> to vector<256x1xf32>
    %cst_14 = arith.constant 1.280000e+02 : f32
    %24 = vector.broadcast %cst_14 : f32 to vector<256x1xf32>
    %25 = arith.divf %23, %24 : vector<256x1xf32>
    %cst_15 = arith.constant 9.99999974E-6 : f32
    %26 = vector.broadcast %cst_15 : f32 to vector<256x1xf32>
    %27 = arith.addf %25, %26 : vector<256x1xf32>
    %28 = math.rsqrt %27 : vector<256x1xf32>
    %29 = vector.broadcast %28 : vector<256x1xf32> to vector<256x128xf32>
    %30 = arith.mulf %20, %29 : vector<256x128xf32>
    %c0_16 = arith.constant 0 : index
    %c0_17 = arith.constant 0 : index
    %31 = vector.load %arg6[%c0_16, %c0_17] : memref<1x128xf32, #tpu.memory_space<vmem>>, vector<1x128xf32>
    %32 = vector.broadcast %31 : vector<1x128xf32> to vector<256x128xf32>
    %33 = arith.mulf %30, %32 : vector<256x128xf32>
    %c0_18 = arith.constant 0 : index
    %c0_19 = arith.constant 0 : index
    %34 = vector.load %arg7[%c0_18, %c0_19] : memref<1x128xf32, #tpu.memory_space<vmem>>, vector<1x128xf32>
    %35 = vector.broadcast %34 : vector<1x128xf32> to vector<256x128xf32>
    %36 = arith.addf %33, %35 : vector<256x128xf32>
    %c0_20 = arith.constant 0 : index
    %c0_21 = arith.constant 0 : index
    %37 = vector.load %arg8[%c0_20, %c0_21] : memref<256x128xf32, #tpu.memory_space<vmem>>, vector<256x128xf32>
    tpu.vector_store %arg8[%c0_20, %c0_21], %36 {strides = array<i32>} : memref<256x128xf32, #tpu.memory_space<vmem>>, vector<256x128xf32>,
    return
  }
  func.func @transform_0(%arg0: i32) -> (i32, i32) {
    %c0_i32 = arith.constant 0 : i32
    %c0_i32_0 = arith.constant 0 : i32
    return %arg0, %c0_i32 : i32, i32
  }
  func.func @transform_1(%arg0: i32) -> (i32, i32) {
    %c0_i32 = arith.constant 0 : i32
    %c0_i32_0 = arith.constant 0 : i32
    %c0_i32_1 = arith.constant 0 : i32
    return %c0_i32, %c0_i32_0 : i32, i32
  }
  func.func @transform_2(%arg0: i32) -> (i32, i32) {
    %c0_i32 = arith.constant 0 : i32
    %c0_i32_0 = arith.constant 0 : i32
    %c0_i32_1 = arith.constant 0 : i32
    return %c0_i32, %c0_i32_0 : i32, i32
  }
  func.func @transform_3(%arg0: i32) -> (i32, i32) {
    %c0_i32 = arith.constant 0 : i32
    %c0_i32_0 = arith.constant 0 : i32
    %c0_i32_1 = arith.constant 0 : i32
    return %c0_i32, %c0_i32_0 : i32, i32
  }
  func.func @transform_4(%arg0: i32) -> (i32, i32) {
    %c0_i32 = arith.constant 0 : i32
    %c0_i32_0 = arith.constant 0 : i32
    %c0_i32_1 = arith.constant 0 : i32
    return %c0_i32, %c0_i32_0 : i32, i32
  }
  func.func @transform_5(%arg0: i32) -> (i32, i32) {
    %c0_i32 = arith.constant 0 : i32
    %c0_i32_0 = arith.constant 0 : i32
    %c0_i32_1 = arith.constant 0 : i32
    return %c0_i32, %c0_i32_0 : i32, i32
  }
  func.func @transform_6(%arg0: i32) -> (i32, i32) {
    %c0_i32 = arith.constant 0 : i32
    %c0_i32_0 = arith.constant 0 : i32
    %c0_i32_1 = arith.constant 0 : i32
    return %c0_i32, %c0_i32_0 : i32, i32
  }
  func.func @transform_7(%arg0: i32) -> (i32, i32) {
    %c0_i32 = arith.constant 0 : i32
    %c0_i32_0 = arith.constant 0 : i32
    return %arg0, %c0_i32 : i32, i32
  }
}

</mosaic_0001>

<llo_original>
// kernel: tpu_custom_call.1
$region0: #{tpu_custom_call.1}
  #allocation0 [shape = 'u32[]', space=smem, size = 0x4, offset = 0x4, fixed_abs, tag = 'smem constant byte address 0x4 - core index']
  #allocation1 [shape = 'u32[72,128]{1,0:T(1,128)}', space=vmem, size = 0x9000, scoped, tag = 'internal scratch']
  %s0 = inlined_call_operand.hbm [shape: f32[512,128], index: 0, kind: input, shape index: {}]
  %s1 = inlined_call_operand.hbm [shape: bf16[128,256], index: 1, kind: input, shape index: {}]
  %s2 = inlined_call_operand.hbm [shape: f32[1,256], index: 2, kind: input, shape index: {}]
  %s3 = inlined_call_operand.hbm [shape: bf16[256,128], index: 3, kind: input, shape index: {}]
  %s4 = inlined_call_operand.vmem [shape: f32[1,128], index: 4, kind: input, shape index: {}]
  %s5 = inlined_call_operand.vmem [shape: f32[1,128], index: 5, kind: input, shape index: {}]
  %s6 = inlined_call_operand.vmem [shape: f32[1,128], index: 6, kind: input, shape index: {}]
  %s7 = inlined_call_operand.hbm [shape: f32[512,128], index: 7, kind: output, shape index: {}]
  %s8 = sld [smem:[#allocation0]]
  $region77: #{tpu_custom_call.1} parent=0
    _
  %s10 = ssub.s32 1, %s8
  %s11 = scalar_select 0, %s10, %s8
  $region1: #{tpu_custom_call.1} parent=0
    #allocation2 [shape = 'u8[262144]{0}', space=vmem, size = 0x40000, scoped, tag = 'input window, operand 0']
    #allocation3 [shape = 's32[2]{0}', space=sflag, size = 0x8, scoped, tag = 'scoped memory for tpu_custom_call.1']
    #allocation4 [shape = 's32[2]{0}', space=sflag, size = 0x8, scoped, tag = 'scoped memory for tpu_custom_call.1']
    #allocation5 [shape = 'u8[65536]{0}', space=vmem, size = 0x10000, scoped, tag = 'input window, operand 1, single buffered']
    #allocation6 [shape = 's32[1]{0}', space=sflag, size = 0x4, scoped, tag = 'scoped memory for tpu_custom_call.1']
    #allocation7 [shape = 'u8[1024]{0}', space=vmem, size = 0x400, scoped, tag = 'input window, operand 2, single buffered']
    #allocation8 [shape = 'u8[65536]{0}', space=vmem, size = 0x10000, scoped, tag = 'input window, operand 3, single buffered']
    #allocation9 [shape = 's32[1]{0}', space=sflag, size = 0x4, scoped, tag = 'scoped memory for tpu_custom_call.1']
    #allocation10 [shape = 'u8[262144]{0}', space=vmem, size = 0x40000, scoped, tag = 'output window, operand 0']
    %12 = vsyncpa [#allocation3], 0
    %s13 = scalar_lea.sflag [#allocation3], 1
    %14 = vsyncpa %s13, 0
    %15 = vsyncpa [#allocation6], 0
    %16 = vsyncpa [#allocation9], 0
    %17 = vsyncpa [#allocation4], 0
    %s18 = scalar_lea.sflag [#allocation4], 1
    %19 = vsyncpa %s18, 0
    loop: start=0, step=1, limit=4
    $region2: #{tpu_custom_call.1} parent=1 // loop_pre_header
      _
    $region3: #{tpu_custom_call.1} parent=1 // loop_header
      %s21 = sphi 0, %s25
      %p22 = scmp.ge.s32.totalorder %s21, 4
      %s31 = sphi 0, %s33
      %s34 = sphi 0, %s31
      %s35 = sphi 0, %s34
      %s51 = sphi 0, %s35
      %s55 = sphi 0, %s55
      %s57 = sphi 0, %s55
      %s58 = sphi 0, %s57
      %s72 = sphi 0, %s58
      %s76 = sphi 0, %s76
      %s78 = sphi 0, %s76
      %s79 = sphi 0, %s78
      %s93 = sphi 0, %s79
      %s97 = sphi 0, %s97
      %s99 = sphi 0, %s97
      %s100 = sphi 0, %s99
      %s114 = sphi 0, %s100
      %s118 = sphi 0, %s118
      %s120 = sphi 0, %s118
      %s121 = sphi 0, %s120
      %s135 = sphi 0, %s121
      %s139 = sphi 0, %s139
      %s141 = sphi 0, %s139
      %s142 = sphi 0, %s141
      %s156 = sphi 0, %s142
      %s160 = sphi 0, %s160
      %s162 = sphi 0, %s160
      %s163 = sphi 0, %s162
      %s177 = sphi 0, %s163
      %s183 = sphi 0, %s185
      %s186 = sphi 0, %s183
      %s187 = sphi 0, %s186
      %s203 = sphi 0, %s187
    $region4: #{tpu_custom_call.1} parent=1 // loop_header_branch
      %24 = sbr.rel (%p22) target = $region8
    $region5: #{tpu_custom_call.1} parent=1 // loop_body
      %s26 = ssub.s32 %s21, 1
      %s27 = ssub.s32 %s21, 2
      %s28 = sadd.s32 %s21, 1
      %s29 = ssub.s32 %s21, %s28
      %p30 = scmp.eq.s32.totalorder %s29, 0
      %s32 = sadd.s32 %s31, 1
      %s33 = scalar_select %p30, %s31, %s32
      %p36 = pneg %p30
      %p37 = scmp.eq.s32.totalorder %s21, 1
      %p38 = por %p36, %p37
      %p39 = scmp.ne.s32.totalorder %s31, %s34
      %p40 = scmp.eq.s32.totalorder %s21, 0
      %p41 = por %p39, %p40
      %p42 = scmp.ne.s32.totalorder %s31, %s34
      %p43 = scmp.eq.s32.totalorder %s26, 1
      %p44 = por %p42, %p43
      %p45 = scmp.ne.s32.totalorder %s34, %s35
      %p46 = scmp.eq.s32.totalorder %s26, 0
      %p47 = por %p45, %p46
      %p48 = scmp.ne.s32.totalorder %s34, %s35
      %p49 = scmp.eq.s32.totalorder %s27, 1
      %p50 = por %p48, %p49
      %p52 = scmp.ne.s32.totalorder %s35, %s51
      %p53 = scmp.eq.s32.totalorder %s27, 0
      %p54 = por %p52, %p53
      %s56 = sadd.s32 %s55, 1
      %p59 = scmp.eq.s32.totalorder %s21, 1
      %p60 = scmp.ne.s32.totalorder %s55, %s57
      %p61 = scmp.eq.s32.totalorder %s21, 0
      %p62 = por %p60, %p61
      %p63 = scmp.ne.s32.totalorder %s55, %s57
      %p64 = scmp.eq.s32.totalorder %s26, 1
      %p65 = por %p63, %p64
      %p66 = scmp.ne.s32.totalorder %s57, %s58
      %p67 = scmp.eq.s32.totalorder %s26, 0
      %p68 = por %p66, %p67
      %p69 = scmp.ne.s32.totalorder %s57, %s58
      %p70 = scmp.eq.s32.totalorder %s27, 1
      %p71 = por %p69, %p70
      %p73 = scmp.ne.s32.totalorder %s58, %s72
      %p74 = scmp.eq.s32.totalorder %s27, 0
      %p75 = por %p73, %p74
      %s77 = sadd.s32 %s76, 1
      %p80 = scmp.eq.s32.totalorder %s21, 1
      %p81 = scmp.ne.s32.totalorder %s76, %s78
      %p82 = scmp.eq.s32.totalorder %s21, 0
      %p83 = por %p81, %p82
      %p84 = scmp.ne.s32.totalorder %s76, %s78
      %p85 = scmp.eq.s32.totalorder %s26, 1
      %p86 = por %p84, %p85
      %p87 = scmp.ne.s32.totalorder %s78, %s79
      %p88 = scmp.eq.s32.totalorder %s26, 0
      %p89 = por %p87, %p88
      %p90 = scmp.ne.s32.totalorder %s78, %s79
      %p91 = scmp.eq.s32.totalorder %s27, 1
      %p92 = por %p90, %p91
      %p94 = scmp.ne.s32.totalorder %s79, %s93
      %p95 = scmp.eq.s32.totalorder %s27, 0
      %p96 = por %p94, %p95
      %s98 = sadd.s32 %s97, 1
      %p101 = scmp.eq.s32.totalorder %s21, 1
      %p102 = scmp.ne.s32.totalorder %s97, %s99
      %p103 = scmp.eq.s32.totalorder %s21, 0
      %p104 = por %p102, %p103
      %p105 = scmp.ne.s32.totalorder %s97, %s99
      %p106 = scmp.eq.s32.totalorder %s26, 1
      %p107 = por %p105, %p106
      %p108 = scmp.ne.s32.totalorder %s99, %s100
      %p109 = scmp.eq.s32.totalorder %s26, 0
      %p110 = por %p108, %p109
      %p111 = scmp.ne.s32.totalorder %s99, %s100
      %p112 = scmp.eq.s32.totalorder %s27, 1
      %p113 = por %p111, %p112
      %p115 = scmp.ne.s32.totalorder %s100, %s114
      %p116 = scmp.eq.s32.totalorder %s27, 0
      %p117 = por %p115, %p116
      %s119 = sadd.s32 %s118, 1
      %p122 = scmp.eq.s32.totalorder %s21, 1
      %p123 = scmp.ne.s32.totalorder %s118, %s120
      %p124 = scmp.eq.s32.totalorder %s21, 0
      %p125 = por %p123, %p124
      %p126 = scmp.ne.s32.totalorder %s118, %s120
      %p127 = scmp.eq.s32.totalorder %s26, 1
      %p128 = por %p126, %p127
      %p129 = scmp.ne.s32.totalorder %s120, %s121
      %p130 = scmp.eq.s32.totalorder %s26, 0
      %p131 = por %p129, %p130
      %p132 = scmp.ne.s32.totalorder %s120, %s121
      %p133 = scmp.eq.s32.totalorder %s27, 1
      %p134 = por %p132, %p133
      %p136 = scmp.ne.s32.totalorder %s121, %s135
      %p137 = scmp.eq.s32.totalorder %s27, 0
      %p138 = por %p136, %p137
      %s140 = sadd.s32 %s139, 1
      %p143 = scmp.eq.s32.totalorder %s21, 1
      %p144 = scmp.ne.s32.totalorder %s139, %s141
      %p145 = scmp.eq.s32.totalorder %s21, 0
      %p146 = por %p144, %p145
      %p147 = scmp.ne.s32.totalorder %s139, %s141
      %p148 = scmp.eq.s32.totalorder %s26, 1
      %p149 = por %p147, %p148
      %p150 = scmp.ne.s32.totalorder %s141, %s142
      %p151 = scmp.eq.s32.totalorder %s26, 0
      %p152 = por %p150, %p151
      %p153 = scmp.ne.s32.totalorder %s141, %s142
      %p154 = scmp.eq.s32.totalorder %s27, 1
      %p155 = por %p153, %p154
      %p157 = scmp.ne.s32.totalorder %s142, %s156
      %p158 = scmp.eq.s32.totalorder %s27, 0
      %p159 = por %p157, %p158
      %s161 = sadd.s32 %s160, 1
      %p164 = scmp.eq.s32.totalorder %s21, 1
      %p165 = scmp.ne.s32.totalorder %s160, %s162
      %p166 = scmp.eq.s32.totalorder %s21, 0
      %p167 = por %p165, %p166
      %p168 = scmp.ne.s32.totalorder %s160, %s162
      %p169 = scmp.eq.s32.totalorder %s26, 1
      %p170 = por %p168, %p169
      %p171 = scmp.ne.s32.totalorder %s162, %s163
      %p172 = scmp.eq.s32.totalorder %s26, 0
      %p173 = por %p171, %p172
      %p174 = scmp.ne.s32.totalorder %s162, %s163
      %p175 = scmp.eq.s32.totalorder %s27, 1
      %p176 = por %p174, %p175
      %p178 = scmp.ne.s32.totalorder %s163, %s177
      %p179 = scmp.eq.s32.totalorder %s27, 0
      %p180 = por %p178, %p179
      %s181 = ssub.s32 %s21, %s28
      %p182 = scmp.eq.s32.totalorder %s181, 0
      %s184 = sadd.s32 %s183, 1
      %s185 = scalar_select %p182, %s183, %s184
      %p188 = pneg %p182
      %p189 = scmp.eq.s32.totalorder %s21, 1
      %p190 = por %p188, %p189
      %p191 = scmp.ne.s32.totalorder %s183, %s186
      %p192 = scmp.eq.s32.totalorder %s21, 0
      %p193 = por %p191, %p192
      %p194 = scmp.ne.s32.totalorder %s183, %s186
      %p195 = scmp.eq.s32.totalorder %s26, 1
      %p196 = por %p194, %p195
      %p197 = scmp.ne.s32.totalorder %s186, %s187
      %p198 = scmp.eq.s32.totalorder %s26, 0
      %p199 = por %p197, %p198
      %p200 = scmp.ne.s32.totalorder %s186, %s187
      %p201 = scmp.eq.s32.totalorder %s27, 1
      %p202 = por %p200, %p201
      %p204 = scmp.ne.s32.totalorder %s187, %s203
      %p205 = scmp.eq.s32.totalorder %s27, 0
      %p206 = por %p204, %p205
      %p207 = scmp.le.s32.totalorder 1, %s21
      %p208 = scmp.lt.s32.totalorder %s21, 3
      %p209 = pnand %p207, %p208
      %p210 = pneg %p209
      // Predicated region
      $region9: #{tpu_custom_call.1} parent=5 // pred_check
        _
      $region10: #{tpu_custom_call.1} parent=5 // pred_check_branch
        %212 = sbr.rel (%p209) target = $region12
      $region11: #{tpu_custom_call.1} parent=5 // pred_region
        %s213 = ssub.s32 %s21, 1
        // Predicated region
        $region13: #{tpu_custom_call.1} parent=11 // pred_check
          %p214 = pneg %p68
        $region14: #{tpu_custom_call.1} parent=11 // pred_check_branch
          %216 = sbr.rel (%p214) target = $region16
        $region15: #{tpu_custom_call.1} parent=11 // pred_region
          %218 = vsyncadd [#allocation6], 0
          %s219 = sshll.u32 %s1, 4
          %s220 = int_to_ptr.hbm [resolvable:$true] %s219
          %s221 = sshll.u32 [#allocation5], 4
          %s222 = int_to_ptr.vmem [resolvable:$true] %s221
          %227 = dma.hbm_to_vmem [thread:$0]  %s220, 2048, %s222, [#allocation6], 128, 128, 8
        $region16: #{tpu_custom_call.1} parent=11 // pred_fallthru
          _
        // Predicated region
        $region17: #{tpu_custom_call.1} parent=11 // pred_check
          %p228 = pneg %p89
        $region18: #{tpu_custom_call.1} parent=11 // pred_check_branch
          %230 = sbr.rel (%p228) target = $region20
        $region19: #{tpu_custom_call.1} parent=11 // pred_region
          %232 = vsyncadd [#allocation6], 0
          %s234 = sshll.u32 %s2, 4
          %s235 = int_to_ptr.hbm [resolvable:$true] %s234
          %s236 = sshll.u32 [#allocation7], 4
          %s237 = int_to_ptr.vmem [resolvable:$true] %s236
          %239 = dma.hbm_to_vmem [thread:$0]  %s235, 32, %s237, [#allocation6]
        $region20: #{tpu_custom_call.1} parent=11 // pred_fallthru
          _
        // Predicated region
        $region21: #{tpu_custom_call.1} parent=11 // pred_check
          %p240 = pneg %p110
        $region22: #{tpu_custom_call.1} parent=11 // pred_check_branch
          %242 = sbr.rel (%p240) target = $region24
        $region23: #{tpu_custom_call.1} parent=11 // pred_region
          %244 = vsyncadd [#allocation9], 0
          %s245 = sshll.u32 %s3, 4
          %s246 = int_to_ptr.hbm [resolvable:$true] %s245
          %s247 = sshll.u32 [#allocation8], 4
          %s248 = int_to_ptr.vmem [resolvable:$true] %s247
          %253 = dma.hbm_to_vmem [thread:$0]  %s246, 2048, %s248, [#allocation9], 64, 64, 4
        $region24: #{tpu_custom_call.1} parent=11 // pred_fallthru
          _
        // Predicated region
        $region25: #{tpu_custom_call.1} parent=11 // pred_check
          %p254 = pneg %p131
        $region26: #{tpu_custom_call.1} parent=11 // pred_check_branch
          %256 = sbr.rel (%p254) target = $region28
        $region27: #{tpu_custom_call.1} parent=11 // pred_region
          _
        $region28: #{tpu_custom_call.1} parent=11 // pred_fallthru
          _
        // Predicated region
        $region29: #{tpu_custom_call.1} parent=11 // pred_check
          %p257 = pneg %p152
        $region30: #{tpu_custom_call.1} parent=11 // pred_check_branch
          %259 = sbr.rel (%p257) target = $region32
        $region31: #{tpu_custom_call.1} parent=11 // pred_region
          _
        $region32: #{tpu_custom_call.1} parent=11 // pred_fallthru
          _
        // Predicated region
        $region33: #{tpu_custom_call.1} parent=11 // pred_check
          %p260 = pneg %p173
        $region34: #{tpu_custom_call.1} parent=11 // pred_check_branch
          %262 = sbr.rel (%p260) target = $region36
        $region35: #{tpu_custom_call.1} parent=11 // pred_region
          _
        $region36: #{tpu_custom_call.1} parent=11 // pred_fallthru
          _
      $region12: #{tpu_custom_call.1} parent=5 // pred_fallthru
        _
      %p263 = scmp.lt.s32.totalorder %s21, 2
      // Predicated region
      $region37: #{tpu_custom_call.1} parent=5 // pred_check
        %p264 = pneg %p263
      $region38: #{tpu_custom_call.1} parent=5 // pred_check_branch
        %266 = sbr.rel (%p264) target = $region40
      $region39: #{tpu_custom_call.1} parent=5 // pred_region
        // Predicated region
        $region41: #{tpu_custom_call.1} parent=39 // pred_check
          %p267 = pneg %p41
        $region42: #{tpu_custom_call.1} parent=39 // pred_check_branch
          %269 = sbr.rel (%p267) target = $region44
        $region43: #{tpu_custom_call.1} parent=39 // pred_region
          %s270 = sand.u32 %s31, 1
          %s271 = scalar_lea.sflag [#allocation3], %s270
          %s272 = sand.u32 %s31, 1
          %s273 = smul.addr %s272, 256
          %s274 = scalar_lea.vmem [#allocation2], %s273
          %s275 = smul.u32 32, %s21
          %277 = vsyncadd %s271, 0
          %s278 = smul.addr %s275, 8
          %s279 = scalar_lea.hbm %s0, %s278
          %s280 = sshll.u32 %s279, 4
          %s281 = int_to_ptr.hbm [resolvable:$true] %s280
          %s282 = sshll.u32 %s274, 4
          %s283 = int_to_ptr.vmem [resolvable:$true] %s282
          %288 = dma.hbm_to_vmem [thread:$0]  %s281, 4096, %s283, %s271, 128, 128, 8
        $region44: #{tpu_custom_call.1} parent=39 // pred_fallthru
          _
      $region40: #{tpu_custom_call.1} parent=5 // pred_fallthru
        _
      %p289 = scmp.le.s32.totalorder 1, %s21
      %p290 = scmp.lt.s32.totalorder %s21, 3
      %p291 = pnand %p289, %p290
      %p292 = pneg %p291
      // Predicated region
      $region45: #{tpu_custom_call.1} parent=5 // pred_check
        _
      $region46: #{tpu_custom_call.1} parent=5 // pred_check_branch
        %294 = sbr.rel (%p291) target = $region48
      $region47: #{tpu_custom_call.1} parent=5 // pred_region
        %s295 = ssub.s32 %s21, 1
        %s296 = sand.u32 %s34, 1
        %s297 = scalar_lea.sflag [#allocation3], %s296
        %s298 = sand.u32 %s34, 1
        %s299 = smul.addr %s298, 256
        %s300 = scalar_lea.vmem [#allocation2], %s299
        // Predicated region
        $region49: #{tpu_custom_call.1} parent=47 // pred_check
          %p301 = pneg %p47
        $region50: #{tpu_custom_call.1} parent=47 // pred_check_branch
          %303 = sbr.rel (%p301) target = $region52
        $region51: #{tpu_custom_call.1} parent=47 // pred_region
          %305 = dma.done %s297, 4096
        $region52: #{tpu_custom_call.1} parent=47 // pred_fallthru
          _
        // Predicated region
        $region53: #{tpu_custom_call.1} parent=47 // pred_check
          %p306 = pneg %p68
        $region54: #{tpu_custom_call.1} parent=47 // pred_check_branch
          %308 = sbr.rel (%p306) target = $region56
        $region55: #{tpu_custom_call.1} parent=47 // pred_region
          %310 = dma.done [#allocation6], 2048
        $region56: #{tpu_custom_call.1} parent=47 // pred_fallthru
          _
        // Predicated region
        $region57: #{tpu_custom_call.1} parent=47 // pred_check
          %p311 = pneg %p89
        $region58: #{tpu_custom_call.1} parent=47 // pred_check_branch
          %313 = sbr.rel (%p311) target = $region60
        $region59: #{tpu_custom_call.1} parent=47 // pred_region
          %315 = dma.done [#allocation6], 32
        $region60: #{tpu_custom_call.1} parent=47 // pred_fallthru
          _
        // Predicated region
        $region61: #{tpu_custom_call.1} parent=47 // pred_check
          %p316 = pneg %p110
        $region62: #{tpu_custom_call.1} parent=47 // pred_check_branch
          %318 = sbr.rel (%p316) target = $region64
        $region63: #{tpu_custom_call.1} parent=47 // pred_region
          %320 = dma.done [#allocation9], 2048
        $region64: #{tpu_custom_call.1} parent=47 // pred_fallthru
          _
        %s321 = sand.u32 %s34, 1
        %s322 = scalar_lea.sflag [#allocation3], %s321
        %s323 = sand.u32 %s34, 1
        %s324 = smul.addr %s323, 256
        %s325 = scalar_lea.vmem [#allocation2], %s324
        %p326 = pneg %p47
        %p327 = pneg %p44
        %p328 = pneg %p68
        %p329 = pneg %p65
        %p330 = pneg %p89
        %p331 = pneg %p86
        %p332 = pneg %p110
        %p333 = pneg %p107
        %p334 = pneg %p131
        %p335 = pneg %p128
        %p336 = pneg %p152
        %p337 = pneg %p149
        %p338 = pneg %p173
        %p339 = pneg %p170
        %p340 = pneg %p199
        %p341 = pneg %p196
        %s342 = sand.u32 %s186, 1
        %s343 = scalar_lea.sflag [#allocation4], %s342
        %s344 = sand.u32 %s186, 1
        %s345 = smul.addr %s344, 256
        %s346 = scalar_lea.vmem [#allocation10], %s345
        %s347 = smul.u32 32, %s26
        %s348 = smul.u32 32, %s26
        %v349 = vld [vmem:[%s300] sm:$0xff]
        %v350 = vld [vmem:[%s300 + $0x8] sm:$0xff]
        %v351 = vld [vmem:[%s300 + $0x10] sm:$0xff]
        %v352 = vld [vmem:[%s300 + $0x18] sm:$0xff]
        %v353 = vld [vmem:[%s300 + $0x20] sm:$0xff]
        %v354 = vld [vmem:[%s300 + $0x28] sm:$0xff]
        %v355 = vld [vmem:[%s300 + $0x30] sm:$0xff]
        %v356 = vld [vmem:[%s300 + $0x38] sm:$0xff]
        %v357 = vld [vmem:[%s300 + $0x40] sm:$0xff]
        %v358 = vld [vmem:[%s300 + $0x48] sm:$0xff]
        %v359 = vld [vmem:[%s300 + $0x50] sm:$0xff]
        %v360 = vld [vmem:[%s300 + $0x58] sm:$0xff]
        %v361 = vld [vmem:[%s300 + $0x60] sm:$0xff]
        %v362 = vld [vmem:[%s300 + $0x68] sm:$0xff]
        %v363 = vld [vmem:[%s300 + $0x70] sm:$0xff]
        %v364 = vld [vmem:[%s300 + $0x78] sm:$0xff]
        %v365 = vld [vmem:[%s300 + $0x80] sm:$0xff]
        %v366 = vld [vmem:[%s300 + $0x88] sm:$0xff]
        %v367 = vld [vmem:[%s300 + $0x90] sm:$0xff]
        %v368 = vld [vmem:[%s300 + $0x98] sm:$0xff]
        %v369 = vld [vmem:[%s300 + $0xa0] sm:$0xff]
        %v370 = vld [vmem:[%s300 + $0xa8] sm:$0xff]
        %v371 = vld [vmem:[%s300 + $0xb0] sm:$0xff]
        %v372 = vld [vmem:[%s300 + $0xb8] sm:$0xff]
        %v373 = vld [vmem:[%s300 + $0xc0] sm:$0xff]
        %v374 = vld [vmem:[%s300 + $0xc8] sm:$0xff]
        %v375 = vld [vmem:[%s300 + $0xd0] sm:$0xff]
        %v376 = vld [vmem:[%s300 + $0xd8] sm:$0xff]
        %v377 = vld [vmem:[%s300 + $0xe0] sm:$0xff]
        %v378 = vld [vmem:[%s300 + $0xe8] sm:$0xff]
        %v379 = vld [vmem:[%s300 + $0xf0] sm:$0xff]
        %v380 = vld [vmem:[%s300 + $0xf8] sm:$0xff]
        %v381 = vpack.c.bf16 %v350, %v349
        %v382 = vpack.c.bf16 %v352, %v351
        %v383 = vpack.c.bf16 %v354, %v353
        %v384 = vpack.c.bf16 %v356, %v355
        %v385 = vpack.c.bf16 %v358, %v357
        %v386 = vpack.c.bf16 %v360, %v359
        %v387 = vpack.c.bf16 %v362, %v361
        %v388 = vpack.c.bf16 %v364, %v363
        %v389 = vpack.c.bf16 %v366, %v365
        %v390 = vpack.c.bf16 %v368, %v367
        %v391 = vpack.c.bf16 %v370, %v369
        %v392 = vpack.c.bf16 %v372, %v371
        %v393 = vpack.c.bf16 %v374, %v373
        %v394 = vpack.c.bf16 %v376, %v375
        %v395 = vpack.c.bf16 %v378, %v377
        %v396 = vpack.c.bf16 %v380, %v379
        %v397 = vld [vmem:[#allocation5] sm:$0xff]
        %v398 = vld [vmem:[#allocation5 + $0x8] sm:$0xff]
        %v399 = vld [vmem:[#allocation5 + $0x10] sm:$0xff]
        %v400 = vld [vmem:[#allocation5 + $0x18] sm:$0xff]
        %v401 = vld [vmem:[#allocation5 + $0x20] sm:$0xff]
        %v402 = vld [vmem:[#allocation5 + $0x28] sm:$0xff]
        %v403 = vld [vmem:[#allocation5 + $0x30] sm:$0xff]
        %v404 = vld [vmem:[#allocation5 + $0x38] sm:$0xff]
        %v405 = vld [vmem:[#allocation5 + $0x40] sm:$0xff]
        %v406 = vld [vmem:[#allocation5 + $0x48] sm:$0xff]
        %v407 = vld [vmem:[#allocation5 + $0x50] sm:$0xff]
        %v408 = vld [vmem:[#allocation5 + $0x58] sm:$0xff]
        %v409 = vld [vmem:[#allocation5 + $0x60] sm:$0xff]
        %v410 = vld [vmem:[#allocation5 + $0x68] sm:$0xff]
        %v411 = vld [vmem:[#allocation5 + $0x70] sm:$0xff]
        %v412 = vld [vmem:[#allocation5 + $0x78] sm:$0xff]
        %v413 = vld [vmem:[#allocation7] sm:$0x3]
        %v415 = vperm.slane %v413, 0
        %v416 = vperm.slane %v413, 1
        %v435 = vunpack.c.l.b16 %v397
        %v436 = vunpack.c.h.b16 %v397
        %v437 = vunpack.c.l.b16 %v398
        %v438 = vunpack.c.h.b16 %v398
        %v439 = vunpack.c.l.b16 %v399
        %v440 = vunpack.c.h.b16 %v399
        %v441 = vunpack.c.l.b16 %v400
        %v442 = vunpack.c.h.b16 %v400
        %v443 = vunpack.c.l.b16 %v401
        %v444 = vunpack.c.h.b16 %v401
        %v445 = vunpack.c.l.b16 %v402
        %v446 = vunpack.c.h.b16 %v402
        %v447 = vunpack.c.l.b16 %v403
        %v448 = vunpack.c.h.b16 %v403
        %v449 = vunpack.c.l.b16 %v404
        %v450 = vunpack.c.h.b16 %v404
        %v451 = vunpack.c.l.b16 %v405
        %v452 = vunpack.c.h.b16 %v405
        %v453 = vunpack.c.l.b16 %v406
        %v454 = vunpack.c.h.b16 %v406
        %v455 = vunpack.c.l.b16 %v407
        %v456 = vunpack.c.h.b16 %v407
        %v457 = vunpack.c.l.b16 %v408
        %v458 = vunpack.c.h.b16 %v408
        %v459 = vunpack.c.l.b16 %v409
        %v460 = vunpack.c.h.b16 %v409
        %v461 = vunpack.c.l.b16 %v410
        %v462 = vunpack.c.h.b16 %v410
        %v463 = vunpack.c.l.b16 %v411
        %v464 = vunpack.c.h.b16 %v411
        %v465 = vunpack.c.l.b16 %v412
        %v466 = vunpack.c.h.b16 %v412
        %v467 = vpack.c.b16 %v437, %v435
        %v468 = vpack.c.b16 %v438, %v436
        %v469 = vpack.c.b16 %v441, %v439
        %v470 = vpack.c.b16 %v442, %v440
        %v471 = vpack.c.b16 %v445, %v443
        %v472 = vpack.c.b16 %v446, %v444
        %v473 = vpack.c.b16 %v449, %v447
        %v474 = vpack.c.b16 %v450, %v448
        %v475 = vpack.c.b16 %v453, %v451
        %v476 = vpack.c.b16 %v454, %v452
        %v477 = vpack.c.b16 %v457, %v455
        %v478 = vpack.c.b16 %v458, %v456
        %v479 = vpack.c.b16 %v461, %v459
        %v480 = vpack.c.b16 %v462, %v460
        %v481 = vpack.c.b16 %v465, %v463
        %v482 = vpack.c.b16 %v466, %v464
        %499 = vmatpush.bf16.msra.mxu0 %v481
        %500 = vmatpush.bf16.msra.mxu0 %v479
        %501 = vmatpush.bf16.msra.mxu0 %v477
        %502 = vmatpush.bf16.msra.mxu0 %v475
        %503 = vmatpush.bf16.msra.mxu0 %v473
        %504 = vmatpush.bf16.msra.mxu0 %v471
        %505 = vmatpush.bf16.msra.mxu0 %v469
        %506 = vmatpush.bf16.msra.mxu0 %v467
        %507 = vmatmul.bf16.gmra.mxu0 %v381
        %v508 = vpop.f32.mrf.mxu0
        %v509 = vadd.f32 %v415, %v508
        %v510 = vpop.f32.mrf.mxu0
        %v511 = vadd.f32 %v415, %v510
        %512 = vmatmul.bf16.gmra.mxu0 %v382
        %v513 = vpop.f32.mrf.mxu0
        %v514 = vadd.f32 %v415, %v513
        %v515 = vpop.f32.mrf.mxu0
        %v516 = vadd.f32 %v415, %v515
        %517 = vmatmul.bf16.gmra.mxu0 %v383
        %v518 = vpop.f32.mrf.mxu0
        %v519 = vadd.f32 %v415, %v518
        %v520 = vpop.f32.mrf.mxu0
        %v521 = vadd.f32 %v415, %v520
        %522 = vmatmul.bf16.gmra.mxu0 %v384
        %v523 = vpop.f32.mrf.mxu0
        %v524 = vadd.f32 %v415, %v523
        %v525 = vpop.f32.mrf.mxu0
        %v526 = vadd.f32 %v415, %v525
        %527 = vmatmul.bf16.gmra.mxu0 %v385
        %v528 = vpop.f32.mrf.mxu0
        %v529 = vadd.f32 %v415, %v528
        %v530 = vpop.f32.mrf.mxu0
        %v531 = vadd.f32 %v415, %v530
        %532 = vmatmul.bf16.gmra.mxu0 %v386
        %v533 = vpop.f32.mrf.mxu0
        %v534 = vadd.f32 %v415, %v533
        %v535 = vpop.f32.mrf.mxu0
        %v536 = vadd.f32 %v415, %v535
        %537 = vmatmul.bf16.gmra.mxu0 %v387
        %v538 = vpop.f32.mrf.mxu0
        %v539 = vadd.f32 %v415, %v538
        %v540 = vpop.f32.mrf.mxu0
        %v541 = vadd.f32 %v415, %v540
        %542 = vmatmul.bf16.gmra.mxu0 %v388
        %v543 = vpop.f32.mrf.mxu0
        %v544 = vadd.f32 %v415, %v543
        %v545 = vpop.f32.mrf.mxu0
        %v546 = vadd.f32 %v415, %v545
        %547 = vmatmul.bf16.gmra.mxu0 %v389
        %v548 = vpop.f32.mrf.mxu0
        %v549 = vadd.f32 %v415, %v548
        %v550 = vpop.f32.mrf.mxu0
        %v551 = vadd.f32 %v415, %v550
        %552 = vmatmul.bf16.gmra.mxu0 %v390
        %v553 = vpop.f32.mrf.mxu0
        %v554 = vadd.f32 %v415, %v553
        %v555 = vpop.f32.mrf.mxu0
        %v556 = vadd.f32 %v415, %v555
        %557 = vmatmul.bf16.gmra.mxu0 %v391
        %v558 = vpop.f32.mrf.mxu0
        %v559 = vadd.f32 %v415, %v558
        %v560 = vpop.f32.mrf.mxu0
        %v561 = vadd.f32 %v415, %v560
        %562 = vmatmul.bf16.gmra.mxu0 %v392
        %v563 = vpop.f32.mrf.mxu0
        %v564 = vadd.f32 %v415, %v563
        %v565 = vpop.f32.mrf.mxu0
        %v566 = vadd.f32 %v415, %v565
        %567 = vmatmul.bf16.gmra.mxu0 %v393
        %v568 = vpop.f32.mrf.mxu0
        %v569 = vadd.f32 %v415, %v568
        %v570 = vpop.f32.mrf.mxu0
        %v571 = vadd.f32 %v415, %v570
        %572 = vmatmul.bf16.gmra.mxu0 %v394
        %v573 = vpop.f32.mrf.mxu0
        %v574 = vadd.f32 %v415, %v573
        %v575 = vpop.f32.mrf.mxu0
        %v576 = vadd.f32 %v415, %v575
        %577 = vmatmul.bf16.gmra.mxu0 %v395
        %v578 = vpop.f32.mrf.mxu0
        %v579 = vadd.f32 %v415, %v578
        %v580 = vpop.f32.mrf.mxu0
        %v581 = vadd.f32 %v415, %v580
        %582 = vmatmul.bf16.gmra.mxu0 %v396
        %v583 = vpop.f32.mrf.mxu0
        %v584 = vadd.f32 %v415, %v583
        %v585 = vpop.f32.mrf.mxu0
        %v586 = vadd.f32 %v415, %v585
        %587 = vdwg.mxu0
        %588 = vmatpush.bf16.msra.mxu0 %v482
        %589 = vmatpush.bf16.msra.mxu0 %v480
        %590 = vmatpush.bf16.msra.mxu0 %v478
        %591 = vmatpush.bf16.msra.mxu0 %v476
        %592 = vmatpush.bf16.msra.mxu0 %v474
        %593 = vmatpush.bf16.msra.mxu0 %v472
        %594 = vmatpush.bf16.msra.mxu0 %v470
        %595 = vmatpush.bf16.msra.mxu0 %v468
        %596 = vmatmul.bf16.gmra.mxu0 %v381
        %v597 = vpop.f32.mrf.mxu0
        %v598 = vadd.f32 %v416, %v597
        %v599 = vpop.f32.mrf.mxu0
        %v600 = vadd.f32 %v416, %v599
        %601 = vmatmul.bf16.gmra.mxu0 %v382
        %v602 = vpop.f32.mrf.mxu0
        %v603 = vadd.f32 %v416, %v602
        %v604 = vpop.f32.mrf.mxu0
        %v605 = vadd.f32 %v416, %v604
        %606 = vmatmul.bf16.gmra.mxu0 %v383
        %v607 = vpop.f32.mrf.mxu0
        %v608 = vadd.f32 %v416, %v607
        %v609 = vpop.f32.mrf.mxu0
        %v610 = vadd.f32 %v416, %v609
        %611 = vmatmul.bf16.gmra.mxu0 %v384
        %v612 = vpop.f32.mrf.mxu0
        %v613 = vadd.f32 %v416, %v612
        %v614 = vpop.f32.mrf.mxu0
        %v615 = vadd.f32 %v416, %v614
        %616 = vmatmul.bf16.gmra.mxu0 %v385
        %v617 = vpop.f32.mrf.mxu0
        %v618 = vadd.f32 %v416, %v617
        %v619 = vpop.f32.mrf.mxu0
        %v620 = vadd.f32 %v416, %v619
        %621 = vmatmul.bf16.gmra.mxu0 %v386
        %v622 = vpop.f32.mrf.mxu0
        %v623 = vadd.f32 %v416, %v622
        %v624 = vpop.f32.mrf.mxu0
        %v625 = vadd.f32 %v416, %v624
        %626 = vmatmul.bf16.gmra.mxu0 %v387
        %v627 = vpop.f32.mrf.mxu0
        %v628 = vadd.f32 %v416, %v627
        %v629 = vpop.f32.mrf.mxu0
        %v630 = vadd.f32 %v416, %v629
        %631 = vmatmul.bf16.gmra.mxu0 %v388
        %v632 = vpop.f32.mrf.mxu0
        %v633 = vadd.f32 %v416, %v632
        %v634 = vpop.f32.mrf.mxu0
        %v635 = vadd.f32 %v416, %v634
        %636 = vmatmul.bf16.gmra.mxu0 %v389
        %v637 = vpop.f32.mrf.mxu0
        %v638 = vadd.f32 %v416, %v637
        %v639 = vpop.f32.mrf.mxu0
        %v640 = vadd.f32 %v416, %v639
        %641 = vmatmul.bf16.gmra.mxu0 %v390
        %v642 = vpop.f32.mrf.mxu0
        %v643 = vadd.f32 %v416, %v642
        %v644 = vpop.f32.mrf.mxu0
        %v645 = vadd.f32 %v416, %v644
        %646 = vmatmul.bf16.gmra.mxu0 %v391
        %v647 = vpop.f32.mrf.mxu0
        %v648 = vadd.f32 %v416, %v647
        %v649 = vpop.f32.mrf.mxu0
        %v650 = vadd.f32 %v416, %v649
        %651 = vmatmul.bf16.gmra.mxu0 %v392
        %v652 = vpop.f32.mrf.mxu0
        %v653 = vadd.f32 %v416, %v652
        %v654 = vpop.f32.mrf.mxu0
        %v655 = vadd.f32 %v416, %v654
        %656 = vmatmul.bf16.gmra.mxu0 %v393
        %v657 = vpop.f32.mrf.mxu0
        %v658 = vadd.f32 %v416, %v657
        %v659 = vpop.f32.mrf.mxu0
        %v660 = vadd.f32 %v416, %v659
        %661 = vmatmul.bf16.gmra.mxu0 %v394
        %v662 = vpop.f32.mrf.mxu0
        %v663 = vadd.f32 %v416, %v662
        %v664 = vpop.f32.mrf.mxu0
        %v665 = vadd.f32 %v416, %v664
        %666 = vmatmul.bf16.gmra.mxu0 %v395
        %v667 = vpop.f32.mrf.mxu0
        %v668 = vadd.f32 %v416, %v667
        %v669 = vpop.f32.mrf.mxu0
        %v670 = vadd.f32 %v416, %v669
        %671 = vmatmul.bf16.gmra.mxu0 %v396
        %v672 = vpop.f32.mrf.mxu0
        %v673 = vadd.f32 %v416, %v672
        %v674 = vpop.f32.mrf.mxu0
        %v675 = vadd.f32 %v416, %v674
        %676 = vdwg.mxu0
        %v677 = vmax.f32 %v509, 0.0
        %v678 = vmax.f32 %v598, 0.0
        %v679 = vmax.f32 %v511, 0.0
        %v680 = vmax.f32 %v600, 0.0
        %v681 = vmax.f32 %v514, 0.0
        %v682 = vmax.f32 %v603, 0.0
        %v683 = vmax.f32 %v516, 0.0
        %v684 = vmax.f32 %v605, 0.0
        %v685 = vmax.f32 %v519, 0.0
        %v686 = vmax.f32 %v608, 0.0
        %v687 = vmax.f32 %v521, 0.0
        %v688 = vmax.f32 %v610, 0.0
        %v689 = vmax.f32 %v524, 0.0
        %v690 = vmax.f32 %v613, 0.0
        %v691 = vmax.f32 %v526, 0.0
        %v692 = vmax.f32 %v615, 0.0
        %v693 = vmax.f32 %v529, 0.0
        %v694 = vmax.f32 %v618, 0.0
        %v695 = vmax.f32 %v531, 0.0
        %v696 = vmax.f32 %v620, 0.0
        %v697 = vmax.f32 %v534, 0.0
        %v698 = vmax.f32 %v623, 0.0
        %v699 = vmax.f32 %v536, 0.0
        %v700 = vmax.f32 %v625, 0.0
        %v701 = vmax.f32 %v539, 0.0
        %v702 = vmax.f32 %v628, 0.0
        %v703 = vmax.f32 %v541, 0.0
        %v704 = vmax.f32 %v630, 0.0
        %v705 = vmax.f32 %v544, 0.0
        %v706 = vmax.f32 %v633, 0.0
        %v707 = vmax.f32 %v546, 0.0
        %v708 = vmax.f32 %v635, 0.0
        %v709 = vmax.f32 %v549, 0.0
        %v710 = vmax.f32 %v638, 0.0
        %v711 = vmax.f32 %v551, 0.0
        %v712 = vmax.f32 %v640, 0.0
        %v713 = vmax.f32 %v554, 0.0
        %v714 = vmax.f32 %v643, 0.0
        %v715 = vmax.f32 %v556, 0.0
        %v716 = vmax.f32 %v645, 0.0
        %v717 = vmax.f32 %v559, 0.0
        %v718 = vmax.f32 %v648, 0.0
        %v719 = vmax.f32 %v561, 0.0
        %v720 = vmax.f32 %v650, 0.0
        %v721 = vmax.f32 %v564, 0.0
        %v722 = vmax.f32 %v653, 0.0
        %v723 = vmax.f32 %v566, 0.0
        %v724 = vmax.f32 %v655, 0.0
        %v725 = vmax.f32 %v569, 0.0
        %v726 = vmax.f32 %v658, 0.0
        %v727 = vmax.f32 %v571, 0.0
        %v728 = vmax.f32 %v660, 0.0
        %v729 = vmax.f32 %v574, 0.0
        %v730 = vmax.f32 %v663, 0.0
        %v731 = vmax.f32 %v576, 0.0
        %v732 = vmax.f32 %v665, 0.0
        %v733 = vmax.f32 %v579, 0.0
        %v734 = vmax.f32 %v668, 0.0
        %v735 = vmax.f32 %v581, 0.0
        %v736 = vmax.f32 %v670, 0.0
        %v737 = vmax.f32 %v584, 0.0
        %v738 = vmax.f32 %v673, 0.0
        %v739 = vmax.f32 %v586, 0.0
        %v740 = vmax.f32 %v675, 0.0
        %v741 = vpack.c.bf16 %v679, %v677
        %v742 = vpack.c.bf16 %v680, %v678
        %v743 = vpack.c.bf16 %v683, %v681
        %v744 = vpack.c.bf16 %v684, %v682
        %v745 = vpack.c.bf16 %v687, %v685
        %v746 = vpack.c.bf16 %v688, %v686
        %v747 = vpack.c.bf16 %v691, %v689
        %v748 = vpack.c.bf16 %v692, %v690
        %v749 = vpack.c.bf16 %v695, %v693
        %v750 = vpack.c.bf16 %v696, %v694
        %v751 = vpack.c.bf16 %v699, %v697
        %v752 = vpack.c.bf16 %v700, %v698
        %v753 = vpack.c.bf16 %v703, %v701
        %v754 = vpack.c.bf16 %v704, %v702
        %v755 = vpack.c.bf16 %v707, %v705
        %v756 = vpack.c.bf16 %v708, %v706
        %v757 = vpack.c.bf16 %v711, %v709
        %v758 = vpack.c.bf16 %v712, %v710
        %v759 = vpack.c.bf16 %v715, %v713
        %v760 = vpack.c.bf16 %v716, %v714
        %v761 = vpack.c.bf16 %v719, %v717
        %v762 = vpack.c.bf16 %v720, %v718
        %v763 = vpack.c.bf16 %v723, %v721
        %v764 = vpack.c.bf16 %v724, %v722
        %v765 = vpack.c.bf16 %v727, %v725
        %v766 = vpack.c.bf16 %v728, %v726
        %v767 = vpack.c.bf16 %v731, %v729
        %v768 = vpack.c.bf16 %v732, %v730
        %v769 = vpack.c.bf16 %v735, %v733
        %v770 = vpack.c.bf16 %v736, %v734
        %v771 = vpack.c.bf16 %v739, %v737
        %v772 = vpack.c.bf16 %v740, %v738
        %v773 = vld [vmem:[#allocation8] sm:$0xf]
        %v774 = vld [vmem:[#allocation8 + $0x4] sm:$0xf]
        %v775 = vld [vmem:[#allocation8 + $0x8] sm:$0xf]
        %v776 = vld [vmem:[#allocation8 + $0xc] sm:$0xf]
        %v777 = vld [vmem:[#allocation8 + $0x10] sm:$0xf]
        %v778 = vld [vmem:[#allocation8 + $0x14] sm:$0xf]
        %v779 = vld [vmem:[#allocation8 + $0x18] sm:$0xf]
        %v780 = vld [vmem:[#allocation8 + $0x1c] sm:$0xf]
        %v781 = vld [vmem:[#allocation8 + $0x20] sm:$0xf]
        %v782 = vld [vmem:[#allocation8 + $0x24] sm:$0xf]
        %v783 = vld [vmem:[#allocation8 + $0x28] sm:$0xf]
        %v784 = vld [vmem:[#allocation8 + $0x2c] sm:$0xf]
        %v785 = vld [vmem:[#allocation8 + $0x30] sm:$0xf]
        %v786 = vld [vmem:[#allocation8 + $0x34] sm:$0xf]
        %v787 = vld [vmem:[#allocation8 + $0x38] sm:$0xf]
        %v788 = vld [vmem:[#allocation8 + $0x3c] sm:$0xf]
        %v789 = vld [vmem:[#allocation8 + $0x40] sm:$0xf]
        %v790 = vld [vmem:[#allocation8 + $0x44] sm:$0xf]
        %v791 = vld [vmem:[#allocation8 + $0x48] sm:$0xf]
        %v792 = vld [vmem:[#allocation8 + $0x4c] sm:$0xf]
        %v793 = vld [vmem:[#allocation8 + $0x50] sm:$0xf]
        %v794 = vld [vmem:[#allocation8 + $0x54] sm:$0xf]
        %v795 = vld [vmem:[#allocation8 + $0x58] sm:$0xf]
        %v796 = vld [vmem:[#allocation8 + $0x5c] sm:$0xf]
        %v797 = vld [vmem:[#allocation8 + $0x60] sm:$0xf]
        %v798 = vld [vmem:[#allocation8 + $0x64] sm:$0xf]
        %v799 = vld [vmem:[#allocation8 + $0x68] sm:$0xf]
        %v800 = vld [vmem:[#allocation8 + $0x6c] sm:$0xf]
        %v801 = vld [vmem:[#allocation8 + $0x70] sm:$0xf]
        %v802 = vld [vmem:[#allocation8 + $0x74] sm:$0xf]
        %v803 = vld [vmem:[#allocation8 + $0x78] sm:$0xf]
        %v804 = vld [vmem:[#allocation8 + $0x7c] sm:$0xf]
        %v805 = vld [vmem:[%s4] sm:$0x1]
        %v807 = vperm.slane %v805, 0
        %v841 = vunpack.c.l.b16 %v773
        %v842 = vunpack.c.l.b16 %v774
        %v843 = vunpack.c.l.b16 %v775
        %v844 = vunpack.c.l.b16 %v776
        %v845 = vunpack.c.l.b16 %v777
        %v846 = vunpack.c.l.b16 %v778
        %v847 = vunpack.c.l.b16 %v779
        %v848 = vunpack.c.l.b16 %v780
        %v849 = vunpack.c.l.b16 %v781
        %v850 = vunpack.c.l.b16 %v782
        %v851 = vunpack.c.l.b16 %v783
        %v852 = vunpack.c.l.b16 %v784
        %v853 = vunpack.c.l.b16 %v785
        %v854 = vunpack.c.l.b16 %v786
        %v855 = vunpack.c.l.b16 %v787
        %v856 = vunpack.c.l.b16 %v788
        %v857 = vunpack.c.l.b16 %v789
        %v858 = vunpack.c.l.b16 %v790
        %v859 = vunpack.c.l.b16 %v791
        %v860 = vunpack.c.l.b16 %v792
        %v861 = vunpack.c.l.b16 %v793
        %v862 = vunpack.c.l.b16 %v794
        %v863 = vunpack.c.l.b16 %v795
        %v864 = vunpack.c.l.b16 %v796
        %v865 = vunpack.c.l.b16 %v797
        %v866 = vunpack.c.l.b16 %v798
        %v867 = vunpack.c.l.b16 %v799
        %v868 = vunpack.c.l.b16 %v800
        %v869 = vunpack.c.l.b16 %v801
        %v870 = vunpack.c.l.b16 %v802
        %v871 = vunpack.c.l.b16 %v803
        %v872 = vunpack.c.l.b16 %v804
        %v873 = vpack.c.b16 %v842, %v841
        %v874 = vpack.c.b16 %v844, %v843
        %v875 = vpack.c.b16 %v846, %v845
        %v876 = vpack.c.b16 %v848, %v847
        %v877 = vpack.c.b16 %v850, %v849
        %v878 = vpack.c.b16 %v852, %v851
        %v879 = vpack.c.b16 %v854, %v853
        %v880 = vpack.c.b16 %v856, %v855
        %v881 = vpack.c.b16 %v858, %v857
        %v882 = vpack.c.b16 %v860, %v859
        %v883 = vpack.c.b16 %v862, %v861
        %v884 = vpack.c.b16 %v864, %v863
        %v885 = vpack.c.b16 %v866, %v865
        %v886 = vpack.c.b16 %v868, %v867
        %v887 = vpack.c.b16 %v870, %v869
        %v888 = vpack.c.b16 %v872, %v871
        %905 = vmatpush.bf16.msra.mxu0 %v880
        %906 = vmatpush.bf16.msra.mxu0 %v879
        %907 = vmatpush.bf16.msra.mxu0 %v878
        %908 = vmatpush.bf16.msra.mxu0 %v877
        %909 = vmatpush.bf16.msra.mxu0 %v876
        %910 = vmatpush.bf16.msra.mxu0 %v875
        %911 = vmatpush.bf16.msra.mxu0 %v874
        %912 = vmatpush.bf16.msra.mxu0 %v873
        %913 = vmatmul.bf16.gmra.mxu0 %v741
        %v914 = vpop.f32.mrf.mxu0
        %v915 = vadd.f32 %v807, %v914
        %v916 = vpop.f32.mrf.mxu0
        %v917 = vadd.f32 %v807, %v916
        %918 = vmatmul.bf16.gmra.mxu0 %v743
        %v919 = vpop.f32.mrf.mxu0
        %v920 = vadd.f32 %v807, %v919
        %v921 = vpop.f32.mrf.mxu0
        %v922 = vadd.f32 %v807, %v921
        %923 = vmatmul.bf16.gmra.mxu0 %v745
        %v924 = vpop.f32.mrf.mxu0
        %v925 = vadd.f32 %v807, %v924
        %v926 = vpop.f32.mrf.mxu0
        %v927 = vadd.f32 %v807, %v926
        %928 = vmatmul.bf16.gmra.mxu0 %v747
        %v929 = vpop.f32.mrf.mxu0
        %v930 = vadd.f32 %v807, %v929
        %v931 = vpop.f32.mrf.mxu0
        %v932 = vadd.f32 %v807, %v931
        %933 = vmatmul.bf16.gmra.mxu0 %v749
        %v934 = vpop.f32.mrf.mxu0
        %v935 = vadd.f32 %v807, %v934
        %v936 = vpop.f32.mrf.mxu0
        %v937 = vadd.f32 %v807, %v936
        %938 = vmatmul.bf16.gmra.mxu0 %v751
        %v939 = vpop.f32.mrf.mxu0
        %v940 = vadd.f32 %v807, %v939
        %v941 = vpop.f32.mrf.mxu0
        %v942 = vadd.f32 %v807, %v941
        %943 = vmatmul.bf16.gmra.mxu0 %v753
        %v944 = vpop.f32.mrf.mxu0
        %v945 = vadd.f32 %v807, %v944
        %v946 = vpop.f32.mrf.mxu0
        %v947 = vadd.f32 %v807, %v946
        %948 = vmatmul.bf16.gmra.mxu0 %v755
        %v949 = vpop.f32.mrf.mxu0
        %v950 = vadd.f32 %v807, %v949
        %v951 = vpop.f32.mrf.mxu0
        %v952 = vadd.f32 %v807, %v951
        %953 = vmatmul.bf16.gmra.mxu0 %v757
        %v954 = vpop.f32.mrf.mxu0
        %v955 = vadd.f32 %v807, %v954
        %v956 = vpop.f32.mrf.mxu0
        %v957 = vadd.f32 %v807, %v956
        %958 = vmatmul.bf16.gmra.mxu0 %v759
        %v959 = vpop.f32.mrf.mxu0
        %v960 = vadd.f32 %v807, %v959
        %v961 = vpop.f32.mrf.mxu0
        %v962 = vadd.f32 %v807, %v961
        %963 = vmatmul.bf16.gmra.mxu0 %v761
        %v964 = vpop.f32.mrf.mxu0
        %v965 = vadd.f32 %v807, %v964
        %v966 = vpop.f32.mrf.mxu0
        %v967 = vadd.f32 %v807, %v966
        %968 = vmatmul.bf16.gmra.mxu0 %v763
        %v969 = vpop.f32.mrf.mxu0
        %v970 = vadd.f32 %v807, %v969
        %v971 = vpop.f32.mrf.mxu0
        %v972 = vadd.f32 %v807, %v971
        %973 = vmatmul.bf16.gmra.mxu0 %v765
        %v974 = vpop.f32.mrf.mxu0
        %v975 = vadd.f32 %v807, %v974
        %v976 = vpop.f32.mrf.mxu0
        %v977 = vadd.f32 %v807, %v976
        %978 = vmatmul.bf16.gmra.mxu0 %v767
        %v979 = vpop.f32.mrf.mxu0
        %v980 = vadd.f32 %v807, %v979
        %v981 = vpop.f32.mrf.mxu0
        %v982 = vadd.f32 %v807, %v981
        %983 = vmatmul.bf16.gmra.mxu0 %v769
        %v984 = vpop.f32.mrf.mxu0
        %v985 = vadd.f32 %v807, %v984
        %v986 = vpop.f32.mrf.mxu0
        %v987 = vadd.f32 %v807, %v986
        %988 = vmatmul.bf16.gmra.mxu0 %v771
        %v989 = vpop.f32.mrf.mxu0
        %v990 = vadd.f32 %v807, %v989
        %v991 = vpop.f32.mrf.mxu0
        %v992 = vadd.f32 %v807, %v991
        %993 = vdwg.mxu0
        %994 = vmatpush.bf16.msra.mxu0 %v888
        %995 = vmatpush.bf16.msra.mxu0 %v887
        %996 = vmatpush.bf16.msra.mxu0 %v886
        %997 = vmatpush.bf16.msra.mxu0 %v885
        %998 = vmatpush.bf16.msra.mxu0 %v884
        %999 = vmatpush.bf16.msra.mxu0 %v883
        %1000 = vmatpush.bf16.msra.mxu0 %v882
        %1001 = vmatpush.bf16.msra.mxu0 %v881
        %1002 = vmatmul.bf16.gmra.mxu0 %v742
        %v1003 = vpop.f32.mrf.mxu0
        %v1004 = vadd.f32 %v915, %v1003
        %v1005 = vpop.f32.mrf.mxu0
        %v1006 = vadd.f32 %v917, %v1005
        %1007 = vmatmul.bf16.gmra.mxu0 %v744
        %v1008 = vpop.f32.mrf.mxu0
        %v1009 = vadd.f32 %v920, %v1008
        %v1010 = vpop.f32.mrf.mxu0
        %v1011 = vadd.f32 %v922, %v1010
        %1012 = vmatmul.bf16.gmra.mxu0 %v746
        %v1013 = vpop.f32.mrf.mxu0
        %v1014 = vadd.f32 %v925, %v1013
        %v1015 = vpop.f32.mrf.mxu0
        %v1016 = vadd.f32 %v927, %v1015
        %1017 = vmatmul.bf16.gmra.mxu0 %v748
        %v1018 = vpop.f32.mrf.mxu0
        %v1019 = vadd.f32 %v930, %v1018
        %v1020 = vpop.f32.mrf.mxu0
        %v1021 = vadd.f32 %v932, %v1020
        %1022 = vmatmul.bf16.gmra.mxu0 %v750
        %v1023 = vpop.f32.mrf.mxu0
        %v1024 = vadd.f32 %v935, %v1023
        %v1025 = vpop.f32.mrf.mxu0
        %v1026 = vadd.f32 %v937, %v1025
        %1027 = vmatmul.bf16.gmra.mxu0 %v752
        %v1028 = vpop.f32.mrf.mxu0
        %v1029 = vadd.f32 %v940, %v1028
        %v1030 = vpop.f32.mrf.mxu0
        %v1031 = vadd.f32 %v942, %v1030
        %1032 = vmatmul.bf16.gmra.mxu0 %v754
        %v1033 = vpop.f32.mrf.mxu0
        %v1034 = vadd.f32 %v945, %v1033
        %v1035 = vpop.f32.mrf.mxu0
        %v1036 = vadd.f32 %v947, %v1035
        %1037 = vmatmul.bf16.gmra.mxu0 %v756
        %v1038 = vpop.f32.mrf.mxu0
        %v1039 = vadd.f32 %v950, %v1038
        %v1040 = vpop.f32.mrf.mxu0
        %v1041 = vadd.f32 %v952, %v1040
        %1042 = vmatmul.bf16.gmra.mxu0 %v758
        %v1043 = vpop.f32.mrf.mxu0
        %v1044 = vadd.f32 %v955, %v1043
        %v1045 = vpop.f32.mrf.mxu0
        %v1046 = vadd.f32 %v957, %v1045
        %1047 = vmatmul.bf16.gmra.mxu0 %v760
        %v1048 = vpop.f32.mrf.mxu0
        %v1049 = vadd.f32 %v960, %v1048
        %v1050 = vpop.f32.mrf.mxu0
        %v1051 = vadd.f32 %v962, %v1050
        %1052 = vmatmul.bf16.gmra.mxu0 %v762
        %v1053 = vpop.f32.mrf.mxu0
        %v1054 = vadd.f32 %v965, %v1053
        %v1055 = vpop.f32.mrf.mxu0
        %v1056 = vadd.f32 %v967, %v1055
        %1057 = vmatmul.bf16.gmra.mxu0 %v764
        %v1058 = vpop.f32.mrf.mxu0
        %v1059 = vadd.f32 %v970, %v1058
        %v1060 = vpop.f32.mrf.mxu0
        %v1061 = vadd.f32 %v972, %v1060
        %1062 = vmatmul.bf16.gmra.mxu0 %v766
        %v1063 = vpop.f32.mrf.mxu0
        %v1064 = vadd.f32 %v975, %v1063
        %v1065 = vpop.f32.mrf.mxu0
        %v1066 = vadd.f32 %v977, %v1065
        %1067 = vmatmul.bf16.gmra.mxu0 %v768
        %v1068 = vpop.f32.mrf.mxu0
        %v1069 = vadd.f32 %v980, %v1068
        %v1070 = vpop.f32.mrf.mxu0
        %v1071 = vadd.f32 %v982, %v1070
        %1072 = vmatmul.bf16.gmra.mxu0 %v770
        %v1073 = vpop.f32.mrf.mxu0
        %v1074 = vadd.f32 %v985, %v1073
        %v1075 = vpop.f32.mrf.mxu0
        %v1076 = vadd.f32 %v987, %v1075
        %1077 = vmatmul.bf16.gmra.mxu0 %v772
        %v1078 = vpop.f32.mrf.mxu0
        %v1079 = vadd.f32 %v990, %v1078
        %v1080 = vpop.f32.mrf.mxu0
        %v1081 = vadd.f32 %v992, %v1080
        %1082 = vdwg.mxu0
        %1083 = vadd.xlane.f32.xlu0 %v1004
        %v1084 = vpop.xlane.xlu0 %1083
        %1085 = vadd.xlane.f32.xlu0 %v1006
        %v1086 = vpop.xlane.xlu0 %1085
        %1087 = vadd.xlane.f32.xlu0 %v1009
        %v1088 = vpop.xlane.xlu0 %1087
        %1089 = vadd.xlane.f32.xlu0 %v1011
        %v1090 = vpop.xlane.xlu0 %1089
        %1091 = vadd.xlane.f32.xlu0 %v1014
        %v1092 = vpop.xlane.xlu0 %1091
        %1093 = vadd.xlane.f32.xlu0 %v1016
        %v1094 = vpop.xlane.xlu0 %1093
        %1095 = vadd.xlane.f32.xlu0 %v1019
        %v1096 = vpop.xlane.xlu0 %1095
        %1097 = vadd.xlane.f32.xlu0 %v1021
        %v1098 = vpop.xlane.xlu0 %1097
        %1099 = vadd.xlane.f32.xlu0 %v1024
        %v1100 = vpop.xlane.xlu0 %1099
        %1101 = vadd.xlane.f32.xlu0 %v1026
        %v1102 = vpop.xlane.xlu0 %1101
        %1103 = vadd.xlane.f32.xlu0 %v1029
        %v1104 = vpop.xlane.xlu0 %1103
        %1105 = vadd.xlane.f32.xlu0 %v1031
        %v1106 = vpop.xlane.xlu0 %1105
        %1107 = vadd.xlane.f32.xlu0 %v1034
        %v1108 = vpop.xlane.xlu0 %1107
        %1109 = vadd.xlane.f32.xlu0 %v1036
        %v1110 = vpop.xlane.xlu0 %1109
        %1111 = vadd.xlane.f32.xlu0 %v1039
        %v1112 = vpop.xlane.xlu0 %1111
        %1113 = vadd.xlane.f32.xlu0 %v1041
        %v1114 = vpop.xlane.xlu0 %1113
        %1115 = vadd.xlane.f32.xlu0 %v1044
        %v1116 = vpop.xlane.xlu0 %1115
        %1117 = vadd.xlane.f32.xlu0 %v1046
        %v1118 = vpop.xlane.xlu0 %1117
        %1119 = vadd.xlane.f32.xlu0 %v1049
        %v1120 = vpop.xlane.xlu0 %1119
        %1121 = vadd.xlane.f32.xlu0 %v1051
        %v1122 = vpop.xlane.xlu0 %1121
        %1123 = vadd.xlane.f32.xlu0 %v1054
        %v1124 = vpop.xlane.xlu0 %1123
        %1125 = vadd.xlane.f32.xlu0 %v1056
        %v1126 = vpop.xlane.xlu0 %1125
        %1127 = vadd.xlane.f32.xlu0 %v1059
        %v1128 = vpop.xlane.xlu0 %1127
        %1129 = vadd.xlane.f32.xlu0 %v1061
        %v1130 = vpop.xlane.xlu0 %1129
        %1131 = vadd.xlane.f32.xlu0 %v1064
        %v1132 = vpop.xlane.xlu0 %1131
        %1133 = vadd.xlane.f32.xlu0 %v1066
        %v1134 = vpop.xlane.xlu0 %1133
        %1135 = vadd.xlane.f32.xlu0 %v1069
        %v1136 = vpop.xlane.xlu0 %1135
        %1137 = vadd.xlane.f32.xlu0 %v1071
        %v1138 = vpop.xlane.xlu0 %1137
        %1139 = vadd.xlane.f32.xlu0 %v1074
        %v1140 = vpop.xlane.xlu0 %1139
        %1141 = vadd.xlane.f32.xlu0 %v1076
        %v1142 = vpop.xlane.xlu0 %1141
        %1143 = vadd.xlane.f32.xlu0 %v1079
        %v1144 = vpop.xlane.xlu0 %1143
        %1145 = vadd.xlane.f32.xlu0 %v1081
        %v1146 = vpop.xlane.xlu0 %1145
        %v1147 = vrcp.pop 128.0
        %v1148 = vmul.f32 128.0, %v1147
        %v1149 = vsub.f32 1.0, %v1148
        %v1150 = vmul.f32 %v1147, %v1149
        %v1151 = vadd.f32 %v1147, %v1150
        %vm1152 = vweird.f32 %v1147
        %v1153 = vsel %vm1152, %v1147, %v1151
        %v1154 = vmul.f32 %v1084, %v1153
        %v1155 = vmul.f32 %v1086, %v1153
        %v1156 = vmul.f32 %v1088, %v1153
        %v1157 = vmul.f32 %v1090, %v1153
        %v1158 = vmul.f32 %v1092, %v1153
        %v1159 = vmul.f32 %v1094, %v1153
        %v1160 = vmul.f32 %v1096, %v1153
        %v1161 = vmul.f32 %v1098, %v1153
        %v1162 = vmul.f32 %v1100, %v1153
        %v1163 = vmul.f32 %v1102, %v1153
        %v1164 = vmul.f32 %v1104, %v1153
        %v1165 = vmul.f32 %v1106, %v1153
        %v1166 = vmul.f32 %v1108, %v1153
        %v1167 = vmul.f32 %v1110, %v1153
        %v1168 = vmul.f32 %v1112, %v1153
        %v1169 = vmul.f32 %v1114, %v1153
        %v1170 = vmul.f32 %v1116, %v1153
        %v1171 = vmul.f32 %v1118, %v1153
        %v1172 = vmul.f32 %v1120, %v1153
        %v1173 = vmul.f32 %v1122, %v1153
        %v1174 = vmul.f32 %v1124, %v1153
        %v1175 = vmul.f32 %v1126, %v1153
        %v1176 = vmul.f32 %v1128, %v1153
        %v1177 = vmul.f32 %v1130, %v1153
        %v1178 = vmul.f32 %v1132, %v1153
        %v1179 = vmul.f32 %v1134, %v1153
        %v1180 = vmul.f32 %v1136, %v1153
        %v1181 = vmul.f32 %v1138, %v1153
        %v1182 = vmul.f32 %v1140, %v1153
        %v1183 = vmul.f32 %v1142, %v1153
        %v1184 = vmul.f32 %v1144, %v1153
        %v1185 = vmul.f32 %v1146, %v1153
        %v1186 = vsub.f32 %v1004, %v1154
        %v1187 = vsub.f32 %v1006, %v1155
        %v1188 = vsub.f32 %v1009, %v1156
        %v1189 = vsub.f32 %v1011, %v1157
        %v1190 = vsub.f32 %v1014, %v1158
        %v1191 = vsub.f32 %v1016, %v1159
        %v1192 = vsub.f32 %v1019, %v1160
        %v1193 = vsub.f32 %v1021, %v1161
        %v1194 = vsub.f32 %v1024, %v1162
        %v1195 = vsub.f32 %v1026, %v1163
        %v1196 = vsub.f32 %v1029, %v1164
        %v1197 = vsub.f32 %v1031, %v1165
        %v1198 = vsub.f32 %v1034, %v1166
        %v1199 = vsub.f32 %v1036, %v1167
        %v1200 = vsub.f32 %v1039, %v1168
        %v1201 = vsub.f32 %v1041, %v1169
        %v1202 = vsub.f32 %v1044, %v1170
        %v1203 = vsub.f32 %v1046, %v1171
        %v1204 = vsub.f32 %v1049, %v1172
        %v1205 = vsub.f32 %v1051, %v1173
        %v1206 = vsub.f32 %v1054, %v1174
        %v1207 = vsub.f32 %v1056, %v1175
        %v1208 = vsub.f32 %v1059, %v1176
        %v1209 = vsub.f32 %v1061, %v1177
        %v1210 = vsub.f32 %v1064, %v1178
        %v1211 = vsub.f32 %v1066, %v1179
        %v1212 = vsub.f32 %v1069, %v1180
        %v1213 = vsub.f32 %v1071, %v1181
        %v1214 = vsub.f32 %v1074, %v1182
        %v1215 = vsub.f32 %v1076, %v1183
        %v1216 = vsub.f32 %v1079, %v1184
        %v1217 = vsub.f32 %v1081, %v1185
        %v1218 = vmul.f32 %v1186, %v1186
        %v1219 = vmul.f32 %v1187, %v1187
        %v1220 = vmul.f32 %v1188, %v1188
        %v1221 = vmul.f32 %v1189, %v1189
        %v1222 = vmul.f32 %v1190, %v1190
        %v1223 = vmul.f32 %v1191, %v1191
        %v1224 = vmul.f32 %v1192, %v1192
        %v1225 = vmul.f32 %v1193, %v1193
        %v1226 = vmul.f32 %v1194, %v1194
        %v1227 = vmul.f32 %v1195, %v1195
        %v1228 = vmul.f32 %v1196, %v1196
        %v1229 = vmul.f32 %v1197, %v1197
        %v1230 = vmul.f32 %v1198, %v1198
        %v1231 = vmul.f32 %v1199, %v1199
        %v1232 = vmul.f32 %v1200, %v1200
        %v1233 = vmul.f32 %v1201, %v1201
        %v1234 = vmul.f32 %v1202, %v1202
        %v1235 = vmul.f32 %v1203, %v1203
        %v1236 = vmul.f32 %v1204, %v1204
        %v1237 = vmul.f32 %v1205, %v1205
        %v1238 = vmul.f32 %v1206, %v1206
        %v1239 = vmul.f32 %v1207, %v1207
        %v1240 = vmul.f32 %v1208, %v1208
        %v1241 = vmul.f32 %v1209, %v1209
        %v1242 = vmul.f32 %v1210, %v1210
        %v1243 = vmul.f32 %v1211, %v1211
        %v1244 = vmul.f32 %v1212, %v1212
        %v1245 = vmul.f32 %v1213, %v1213
        %v1246 = vmul.f32 %v1214, %v1214
        %v1247 = vmul.f32 %v1215, %v1215
        %v1248 = vmul.f32 %v1216, %v1216
        %v1249 = vmul.f32 %v1217, %v1217
        %1250 = vadd.xlane.f32.xlu0 %v1218
        %v1251 = vpop.xlane.xlu0 %1250
        %1252 = vadd.xlane.f32.xlu0 %v1219
        %v1253 = vpop.xlane.xlu0 %1252
        %1254 = vadd.xlane.f32.xlu0 %v1220
        %v1255 = vpop.xlane.xlu0 %1254
        %1256 = vadd.xlane.f32.xlu0 %v1221
        %v1257 = vpop.xlane.xlu0 %1256
        %1258 = vadd.xlane.f32.xlu0 %v1222
        %v1259 = vpop.xlane.xlu0 %1258
        %1260 = vadd.xlane.f32.xlu0 %v1223
        %v1261 = vpop.xlane.xlu0 %1260
        %1262 = vadd.xlane.f32.xlu0 %v1224
        %v1263 = vpop.xlane.xlu0 %1262
        %1264 = vadd.xlane.f32.xlu0 %v1225
        %v1265 = vpop.xlane.xlu0 %1264
        %1266 = vadd.xlane.f32.xlu0 %v1226
        %v1267 = vpop.xlane.xlu0 %1266
        %1268 = vadd.xlane.f32.xlu0 %v1227
        %v1269 = vpop.xlane.xlu0 %1268
        %1270 = vadd.xlane.f32.xlu0 %v1228
        %v1271 = vpop.xlane.xlu0 %1270
        %1272 = vadd.xlane.f32.xlu0 %v1229
        %v1273 = vpop.xlane.xlu0 %1272
        %1274 = vadd.xlane.f32.xlu0 %v1230
        %v1275 = vpop.xlane.xlu0 %1274
        %1276 = vadd.xlane.f32.xlu0 %v1231
        %v1277 = vpop.xlane.xlu0 %1276
        %1278 = vadd.xlane.f32.xlu0 %v1232
        %v1279 = vpop.xlane.xlu0 %1278
        %1280 = vadd.xlane.f32.xlu0 %v1233
        %v1281 = vpop.xlane.xlu0 %1280
        %1282 = vadd.xlane.f32.xlu0 %v1234
        %v1283 = vpop.xlane.xlu0 %1282
        %1284 = vadd.xlane.f32.xlu0 %v1235
        %v1285 = vpop.xlane.xlu0 %1284
        %1286 = vadd.xlane.f32.xlu0 %v1236
        %v1287 = vpop.xlane.xlu0 %1286
        %1288 = vadd.xlane.f32.xlu0 %v1237
        %v1289 = vpop.xlane.xlu0 %1288
        %1290 = vadd.xlane.f32.xlu0 %v1238
        %v1291 = vpop.xlane.xlu0 %1290
        %1292 = vadd.xlane.f32.xlu0 %v1239
        %v1293 = vpop.xlane.xlu0 %1292
        %1294 = vadd.xlane.f32.xlu0 %v1240
        %v1295 = vpop.xlane.xlu0 %1294
        %1296 = vadd.xlane.f32.xlu0 %v1241
        %v1297 = vpop.xlane.xlu0 %1296
        %1298 = vadd.xlane.f32.xlu0 %v1242
        %v1299 = vpop.xlane.xlu0 %1298
        %1300 = vadd.xlane.f32.xlu0 %v1243
        %v1301 = vpop.xlane.xlu0 %1300
        %1302 = vadd.xlane.f32.xlu0 %v1244
        %v1303 = vpop.xlane.xlu0 %1302
        %1304 = vadd.xlane.f32.xlu0 %v1245
        %v1305 = vpop.xlane.xlu0 %1304
        %1306 = vadd.xlane.f32.xlu0 %v1246
        %v1307 = vpop.xlane.xlu0 %1306
        %1308 = vadd.xlane.f32.xlu0 %v1247
        %v1309 = vpop.xlane.xlu0 %1308
        %1310 = vadd.xlane.f32.xlu0 %v1248
        %v1311 = vpop.xlane.xlu0 %1310
        %1312 = vadd.xlane.f32.xlu0 %v1249
        %v1313 = vpop.xlane.xlu0 %1312
        %v1314 = vmul.f32 %v1251, %v1153
        %v1315 = vmul.f32 %v1253, %v1153
        %v1316 = vmul.f32 %v1255, %v1153
        %v1317 = vmul.f32 %v1257, %v1153
        %v1318 = vmul.f32 %v1259, %v1153
        %v1319 = vmul.f32 %v1261, %v1153
        %v1320 = vmul.f32 %v1263, %v1153
        %v1321 = vmul.f32 %v1265, %v1153
        %v1322 = vmul.f32 %v1267, %v1153
        %v1323 = vmul.f32 %v1269, %v1153
        %v1324 = vmul.f32 %v1271, %v1153
        %v1325 = vmul.f32 %v1273, %v1153
        %v1326 = vmul.f32 %v1275, %v1153
        %v1327 = vmul.f32 %v1277, %v1153
        %v1328 = vmul.f32 %v1279, %v1153
        %v1329 = vmul.f32 %v1281, %v1153
        %v1330 = vmul.f32 %v1283, %v1153
        %v1331 = vmul.f32 %v1285, %v1153
        %v1332 = vmul.f32 %v1287, %v1153
        %v1333 = vmul.f32 %v1289, %v1153
        %v1334 = vmul.f32 %v1291, %v1153
        %v1335 = vmul.f32 %v1293, %v1153
        %v1336 = vmul.f32 %v1295, %v1153
        %v1337 = vmul.f32 %v1297, %v1153
        %v1338 = vmul.f32 %v1299, %v1153
        %v1339 = vmul.f32 %v1301, %v1153
        %v1340 = vmul.f32 %v1303, %v1153
        %v1341 = vmul.f32 %v1305, %v1153
        %v1342 = vmul.f32 %v1307, %v1153
        %v1343 = vmul.f32 %v1309, %v1153
        %v1344 = vmul.f32 %v1311, %v1153
        %v1345 = vmul.f32 %v1313, %v1153
        %v1346 = vadd.f32 %v1314, 1e-05
        %v1347 = vadd.f32 %v1315, 1e-05
        %v1348 = vadd.f32 %v1316, 1e-05
        %v1349 = vadd.f32 %v1317, 1e-05
        %v1350 = vadd.f32 %v1318, 1e-05
        %v1351 = vadd.f32 %v1319, 1e-05
        %v1352 = vadd.f32 %v1320, 1e-05
        %v1353 = vadd.f32 %v1321, 1e-05
        %v1354 = vadd.f32 %v1322, 1e-05
        %v1355 = vadd.f32 %v1323, 1e-05
        %v1356 = vadd.f32 %v1324, 1e-05
        %v1357 = vadd.f32 %v1325, 1e-05
        %v1358 = vadd.f32 %v1326, 1e-05
        %v1359 = vadd.f32 %v1327, 1e-05
        %v1360 = vadd.f32 %v1328, 1e-05
        %v1361 = vadd.f32 %v1329, 1e-05
        %v1362 = vadd.f32 %v1330, 1e-05
        %v1363 = vadd.f32 %v1331, 1e-05
        %v1364 = vadd.f32 %v1332, 1e-05
        %v1365 = vadd.f32 %v1333, 1e-05
        %v1366 = vadd.f32 %v1334, 1e-05
        %v1367 = vadd.f32 %v1335, 1e-05
        %v1368 = vadd.f32 %v1336, 1e-05
        %v1369 = vadd.f32 %v1337, 1e-05
        %v1370 = vadd.f32 %v1338, 1e-05
        %v1371 = vadd.f32 %v1339, 1e-05
        %v1372 = vadd.f32 %v1340, 1e-05
        %v1373 = vadd.f32 %v1341, 1e-05
        %v1374 = vadd.f32 %v1342, 1e-05
        %v1375 = vadd.f32 %v1343, 1e-05
        %v1376 = vadd.f32 %v1344, 1e-05
        %v1377 = vadd.f32 %v1345, 1e-05
        %v1378 = vrsqrt.pop %v1346
        %v1379 = vmul.f32 %v1378, %v1346
        %v1380 = vmul.f32 %v1379, %v1378
        %v1381 = vmul.f32 0.5, %v1380
        %v1382 = vsub.f32 1.5, %v1381
        %v1383 = vmul.f32 %v1378, %v1382
        %vm1384 = vweird.f32 %v1346
        %vm1385 = vweird.f32 %v1378
        %vm1386 = vmor %vm1384, %vm1385
        %v1387 = vsel %vm1386, %v1378, %v1383
        %v1388 = vrsqrt.pop %v1347
        %v1389 = vmul.f32 %v1388, %v1347
        %v1390 = vmul.f32 %v1389, %v1388
        %v1391 = vmul.f32 0.5, %v1390
        %v1392 = vsub.f32 1.5, %v1391
        %v1393 = vmul.f32 %v1388, %v1392
        %vm1394 = vweird.f32 %v1347
        %vm1395 = vweird.f32 %v1388
        %vm1396 = vmor %vm1394, %vm1395
        %v1397 = vsel %vm1396, %v1388, %v1393
        %v1398 = vrsqrt.pop %v1348
        %v1399 = vmul.f32 %v1398, %v1348
        %v1400 = vmul.f32 %v1399, %v1398
        %v1401 = vmul.f32 0.5, %v1400
        %v1402 = vsub.f32 1.5, %v1401
        %v1403 = vmul.f32 %v1398, %v1402
        %vm1404 = vweird.f32 %v1348
        %vm1405 = vweird.f32 %v1398
        %vm1406 = vmor %vm1404, %vm1405
        %v1407 = vsel %vm1406, %v1398, %v1403
        %v1408 = vrsqrt.pop %v1349
        %v1409 = vmul.f32 %v1408, %v1349
        %v1410 = vmul.f32 %v1409, %v1408
        %v1411 = vmul.f32 0.5, %v1410
        %v1412 = vsub.f32 1.5, %v1411
        %v1413 = vmul.f32 %v1408, %v1412
        %vm1414 = vweird.f32 %v1349
        %vm1415 = vweird.f32 %v1408
        %vm1416 = vmor %vm1414, %vm1415
        %v1417 = vsel %vm1416, %v1408, %v1413
        %v1418 = vrsqrt.pop %v1350
        %v1419 = vmul.f32 %v1418, %v1350
        %v1420 = vmul.f32 %v1419, %v1418
        %v1421 = vmul.f32 0.5, %v1420
        %v1422 = vsub.f32 1.5, %v1421
        %v1423 = vmul.f32 %v1418, %v1422
        %vm1424 = vweird.f32 %v1350
        %vm1425 = vweird.f32 %v1418
        %vm1426 = vmor %vm1424, %vm1425
        %v1427 = vsel %vm1426, %v1418, %v1423
        %v1428 = vrsqrt.pop %v1351
        %v1429 = vmul.f32 %v1428, %v1351
        %v1430 = vmul.f32 %v1429, %v1428
        %v1431 = vmul.f32 0.5, %v1430
        %v1432 = vsub.f32 1.5, %v1431
        %v1433 = vmul.f32 %v1428, %v1432
        %vm1434 = vweird.f32 %v1351
        %vm1435 = vweird.f32 %v1428
        %vm1436 = vmor %vm1434, %vm1435
        %v1437 = vsel %vm1436, %v1428, %v1433
        %v1438 = vrsqrt.pop %v1352
        %v1439 = vmul.f32 %v1438, %v1352
        %v1440 = vmul.f32 %v1439, %v1438
        %v1441 = vmul.f32 0.5, %v1440
        %v1442 = vsub.f32 1.5, %v1441
        %v1443 = vmul.f32 %v1438, %v1442
        %vm1444 = vweird.f32 %v1352
        %vm1445 = vweird.f32 %v1438
        %vm1446 = vmor %vm1444, %vm1445
        %v1447 = vsel %vm1446, %v1438, %v1443
        %v1448 = vrsqrt.pop %v1353
        %v1449 = vmul.f32 %v1448, %v1353
        %v1450 = vmul.f32 %v1449, %v1448
        %v1451 = vmul.f32 0.5, %v1450
        %v1452 = vsub.f32 1.5, %v1451
        %v1453 = vmul.f32 %v1448, %v1452
        %vm1454 = vweird.f32 %v1353
        %vm1455 = vweird.f32 %v1448
        %vm1456 = vmor %vm1454, %vm1455
        %v1457 = vsel %vm1456, %v1448, %v1453
        %v1458 = vrsqrt.pop %v1354
        %v1459 = vmul.f32 %v1458, %v1354
        %v1460 = vmul.f32 %v1459, %v1458
        %v1461 = vmul.f32 0.5, %v1460
        %v1462 = vsub.f32 1.5, %v1461
        %v1463 = vmul.f32 %v1458, %v1462
        %vm1464 = vweird.f32 %v1354
        %vm1465 = vweird.f32 %v1458
        %vm1466 = vmor %vm1464, %vm1465
        %v1467 = vsel %vm1466, %v1458, %v1463
        %v1468 = vrsqrt.pop %v1355
        %v1469 = vmul.f32 %v1468, %v1355
        %v1470 = vmul.f32 %v1469, %v1468
        %v1471 = vmul.f32 0.5, %v1470
        %v1472 = vsub.f32 1.5, %v1471
        %v1473 = vmul.f32 %v1468, %v1472
        %vm1474 = vweird.f32 %v1355
        %vm1475 = vweird.f32 %v1468
        %vm1476 = vmor %vm1474, %vm1475
        %v1477 = vsel %vm1476, %v1468, %v1473
        %v1478 = vrsqrt.pop %v1356
        %v1479 = vmul.f32 %v1478, %v1356
        %v1480 = vmul.f32 %v1479, %v1478
        %v1481 = vmul.f32 0.5, %v1480
        %v1482 = vsub.f32 1.5, %v1481
        %v1483 = vmul.f32 %v1478, %v1482
        %vm1484 = vweird.f32 %v1356
        %vm1485 = vweird.f32 %v1478
        %vm1486 = vmor %vm1484, %vm1485
        %v1487 = vsel %vm1486, %v1478, %v1483
        %v1488 = vrsqrt.pop %v1357
        %v1489 = vmul.f32 %v1488, %v1357
        %v1490 = vmul.f32 %v1489, %v1488
        %v1491 = vmul.f32 0.5, %v1490
        %v1492 = vsub.f32 1.5, %v1491
        %v1493 = vmul.f32 %v1488, %v1492
        %vm1494 = vweird.f32 %v1357
        %vm1495 = vweird.f32 %v1488
        %vm1496 = vmor %vm1494, %vm1495
        %v1497 = vsel %vm1496, %v1488, %v1493
        %v1498 = vrsqrt.pop %v1358
        %v1499 = vmul.f32 %v1498, %v1358
        %v1500 = vmul.f32 %v1499, %v1498
        %v1501 = vmul.f32 0.5, %v1500
        %v1502 = vsub.f32 1.5, %v1501
        %v1503 = vmul.f32 %v1498, %v1502
        %vm1504 = vweird.f32 %v1358
        %vm1505 = vweird.f32 %v1498
        %vm1506 = vmor %vm1504, %vm1505
        %v1507 = vsel %vm1506, %v1498, %v1503
        %v1508 = vrsqrt.pop %v1359
        %v1509 = vmul.f32 %v1508, %v1359
        %v1510 = vmul.f32 %v1509, %v1508
        %v1511 = vmul.f32 0.5, %v1510
        %v1512 = vsub.f32 1.5, %v1511
        %v1513 = vmul.f32 %v1508, %v1512
        %vm1514 = vweird.f32 %v1359
        %vm1515 = vweird.f32 %v1508
        %vm1516 = vmor %vm1514, %vm1515
        %v1517 = vsel %vm1516, %v1508, %v1513
        %v1518 = vrsqrt.pop %v1360
        %v1519 = vmul.f32 %v1518, %v1360
        %v1520 = vmul.f32 %v1519, %v1518
        %v1521 = vmul.f32 0.5, %v1520
        %v1522 = vsub.f32 1.5, %v1521
        %v1523 = vmul.f32 %v1518, %v1522
        %vm1524 = vweird.f32 %v1360
        %vm1525 = vweird.f32 %v1518
        %vm1526 = vmor %vm1524, %vm1525
        %v1527 = vsel %vm1526, %v1518, %v1523
        %v1528 = vrsqrt.pop %v1361
        %v1529 = vmul.f32 %v1528, %v1361
        %v1530 = vmul.f32 %v1529, %v1528
        %v1531 = vmul.f32 0.5, %v1530
        %v1532 = vsub.f32 1.5, %v1531
        %v1533 = vmul.f32 %v1528, %v1532
        %vm1534 = vweird.f32 %v1361
        %vm1535 = vweird.f32 %v1528
        %vm1536 = vmor %vm1534, %vm1535
        %v1537 = vsel %vm1536, %v1528, %v1533
        %v1538 = vrsqrt.pop %v1362
        %v1539 = vmul.f32 %v1538, %v1362
        %v1540 = vmul.f32 %v1539, %v1538
        %v1541 = vmul.f32 0.5, %v1540
        %v1542 = vsub.f32 1.5, %v1541
        %v1543 = vmul.f32 %v1538, %v1542
        %vm1544 = vweird.f32 %v1362
        %vm1545 = vweird.f32 %v1538
        %vm1546 = vmor %vm1544, %vm1545
        %v1547 = vsel %vm1546, %v1538, %v1543
        %v1548 = vrsqrt.pop %v1363
        %v1549 = vmul.f32 %v1548, %v1363
        %v1550 = vmul.f32 %v1549, %v1548
        %v1551 = vmul.f32 0.5, %v1550
        %v1552 = vsub.f32 1.5, %v1551
        %v1553 = vmul.f32 %v1548, %v1552
        %vm1554 = vweird.f32 %v1363
        %vm1555 = vweird.f32 %v1548
        %vm1556 = vmor %vm1554, %vm1555
        %v1557 = vsel %vm1556, %v1548, %v1553
        %v1558 = vrsqrt.pop %v1364
        %v1559 = vmul.f32 %v1558, %v1364
        %v1560 = vmul.f32 %v1559, %v1558
        %v1561 = vmul.f32 0.5, %v1560
        %v1562 = vsub.f32 1.5, %v1561
        %v1563 = vmul.f32 %v1558, %v1562
        %vm1564 = vweird.f32 %v1364
        %vm1565 = vweird.f32 %v1558
        %vm1566 = vmor %vm1564, %vm1565
        %v1567 = vsel %vm1566, %v1558, %v1563
        %v1568 = vrsqrt.pop %v1365
        %v1569 = vmul.f32 %v1568, %v1365
        %v1570 = vmul.f32 %v1569, %v1568
        %v1571 = vmul.f32 0.5, %v1570
        %v1572 = vsub.f32 1.5, %v1571
        %v1573 = vmul.f32 %v1568, %v1572
        %vm1574 = vweird.f32 %v1365
        %vm1575 = vweird.f32 %v1568
        %vm1576 = vmor %vm1574, %vm1575
        %v1577 = vsel %vm1576, %v1568, %v1573
        %v1578 = vrsqrt.pop %v1366
        %v1579 = vmul.f32 %v1578, %v1366
        %v1580 = vmul.f32 %v1579, %v1578
        %v1581 = vmul.f32 0.5, %v1580
        %v1582 = vsub.f32 1.5, %v1581
        %v1583 = vmul.f32 %v1578, %v1582
        %vm1584 = vweird.f32 %v1366
        %vm1585 = vweird.f32 %v1578
        %vm1586 = vmor %vm1584, %vm1585
        %v1587 = vsel %vm1586, %v1578, %v1583
        %v1588 = vrsqrt.pop %v1367
        %v1589 = vmul.f32 %v1588, %v1367
        %v1590 = vmul.f32 %v1589, %v1588
        %v1591 = vmul.f32 0.5, %v1590
        %v1592 = vsub.f32 1.5, %v1591
        %v1593 = vmul.f32 %v1588, %v1592
        %vm1594 = vweird.f32 %v1367
        %vm1595 = vweird.f32 %v1588
        %vm1596 = vmor %vm1594, %vm1595
        %v1597 = vsel %vm1596, %v1588, %v1593
        %v1598 = vrsqrt.pop %v1368
        %v1599 = vmul.f32 %v1598, %v1368
        %v1600 = vmul.f32 %v1599, %v1598
        %v1601 = vmul.f32 0.5, %v1600
        %v1602 = vsub.f32 1.5, %v1601
        %v1603 = vmul.f32 %v1598, %v1602
        %vm1604 = vweird.f32 %v1368
        %vm1605 = vweird.f32 %v1598
        %vm1606 = vmor %vm1604, %vm1605
        %v1607 = vsel %vm1606, %v1598, %v1603
        %v1608 = vrsqrt.pop %v1369
        %v1609 = vmul.f32 %v1608, %v1369
        %v1610 = vmul.f32 %v1609, %v1608
        %v1611 = vmul.f32 0.5, %v1610
        %v1612 = vsub.f32 1.5, %v1611
        %v1613 = vmul.f32 %v1608, %v1612
        %vm1614 = vweird.f32 %v1369
        %vm1615 = vweird.f32 %v1608
        %vm1616 = vmor %vm1614, %vm1615
        %v1617 = vsel %vm1616, %v1608, %v1613
        %v1618 = vrsqrt.pop %v1370
        %v1619 = vmul.f32 %v1618, %v1370
        %v1620 = vmul.f32 %v1619, %v1618
        %v1621 = vmul.f32 0.5, %v1620
        %v1622 = vsub.f32 1.5, %v1621
        %v1623 = vmul.f32 %v1618, %v1622
        %vm1624 = vweird.f32 %v1370
        %vm1625 = vweird.f32 %v1618
        %vm1626 = vmor %vm1624, %vm1625
        %v1627 = vsel %vm1626, %v1618, %v1623
        %v1628 = vrsqrt.pop %v1371
        %v1629 = vmul.f32 %v1628, %v1371
        %v1630 = vmul.f32 %v1629, %v1628
        %v1631 = vmul.f32 0.5, %v1630
        %v1632 = vsub.f32 1.5, %v1631
        %v1633 = vmul.f32 %v1628, %v1632
        %vm1634 = vweird.f32 %v1371
        %vm1635 = vweird.f32 %v1628
        %vm1636 = vmor %vm1634, %vm1635
        %v1637 = vsel %vm1636, %v1628, %v1633
        %v1638 = vrsqrt.pop %v1372
        %v1639 = vmul.f32 %v1638, %v1372
        %v1640 = vmul.f32 %v1639, %v1638
        %v1641 = vmul.f32 0.5, %v1640
        %v1642 = vsub.f32 1.5, %v1641
        %v1643 = vmul.f32 %v1638, %v1642
        %vm1644 = vweird.f32 %v1372
        %vm1645 = vweird.f32 %v1638
        %vm1646 = vmor %vm1644, %vm1645
        %v1647 = vsel %vm1646, %v1638, %v1643
        %v1648 = vrsqrt.pop %v1373
        %v1649 = vmul.f32 %v1648, %v1373
        %v1650 = vmul.f32 %v1649, %v1648
        %v1651 = vmul.f32 0.5, %v1650
        %v1652 = vsub.f32 1.5, %v1651
        %v1653 = vmul.f32 %v1648, %v1652
        %vm1654 = vweird.f32 %v1373
        %vm1655 = vweird.f32 %v1648
        %vm1656 = vmor %vm1654, %vm1655
        %v1657 = vsel %vm1656, %v1648, %v1653
        %v1658 = vrsqrt.pop %v1374
        %v1659 = vmul.f32 %v1658, %v1374
        %v1660 = vmul.f32 %v1659, %v1658
        %v1661 = vmul.f32 0.5, %v1660
        %v1662 = vsub.f32 1.5, %v1661
        %v1663 = vmul.f32 %v1658, %v1662
        %vm1664 = vweird.f32 %v1374
        %vm1665 = vweird.f32 %v1658
        %vm1666 = vmor %vm1664, %vm1665
        %v1667 = vsel %vm1666, %v1658, %v1663
        %v1668 = vrsqrt.pop %v1375
        %v1669 = vmul.f32 %v1668, %v1375
        %v1670 = vmul.f32 %v1669, %v1668
        %v1671 = vmul.f32 0.5, %v1670
        %v1672 = vsub.f32 1.5, %v1671
        %v1673 = vmul.f32 %v1668, %v1672
        %vm1674 = vweird.f32 %v1375
        %vm1675 = vweird.f32 %v1668
        %vm1676 = vmor %vm1674, %vm1675
        %v1677 = vsel %vm1676, %v1668, %v1673
        %v1678 = vrsqrt.pop %v1376
        %v1679 = vmul.f32 %v1678, %v1376
        %v1680 = vmul.f32 %v1679, %v1678
        %v1681 = vmul.f32 0.5, %v1680
        %v1682 = vsub.f32 1.5, %v1681
        %v1683 = vmul.f32 %v1678, %v1682
        %vm1684 = vweird.f32 %v1376
        %vm1685 = vweird.f32 %v1678
        %vm1686 = vmor %vm1684, %vm1685
        %v1687 = vsel %vm1686, %v1678, %v1683
        %v1688 = vrsqrt.pop %v1377
        %v1689 = vmul.f32 %v1688, %v1377
        %v1690 = vmul.f32 %v1689, %v1688
        %v1691 = vmul.f32 0.5, %v1690
        %v1692 = vsub.f32 1.5, %v1691
        %v1693 = vmul.f32 %v1688, %v1692
        %vm1694 = vweird.f32 %v1377
        %vm1695 = vweird.f32 %v1688
        %vm1696 = vmor %vm1694, %vm1695
        %v1697 = vsel %vm1696, %v1688, %v1693
        %v1698 = vmul.f32 %v1186, %v1387
        %v1699 = vmul.f32 %v1187, %v1397
        %v1700 = vmul.f32 %v1188, %v1407
        %v1701 = vmul.f32 %v1189, %v1417
        %v1702 = vmul.f32 %v1190, %v1427
        %v1703 = vmul.f32 %v1191, %v1437
        %v1704 = vmul.f32 %v1192, %v1447
        %v1705 = vmul.f32 %v1193, %v1457
        %v1706 = vmul.f32 %v1194, %v1467
        %v1707 = vmul.f32 %v1195, %v1477
        %v1708 = vmul.f32 %v1196, %v1487
        %v1709 = vmul.f32 %v1197, %v1497
        %v1710 = vmul.f32 %v1198, %v1507
        %v1711 = vmul.f32 %v1199, %v1517
        %v1712 = vmul.f32 %v1200, %v1527
        %v1713 = vmul.f32 %v1201, %v1537
        %v1714 = vmul.f32 %v1202, %v1547
        %v1715 = vmul.f32 %v1203, %v1557
        %v1716 = vmul.f32 %v1204, %v1567
        %v1717 = vmul.f32 %v1205, %v1577
        %v1718 = vmul.f32 %v1206, %v1587
        %v1719 = vmul.f32 %v1207, %v1597
        %v1720 = vmul.f32 %v1208, %v1607
        %v1721 = vmul.f32 %v1209, %v1617
        %v1722 = vmul.f32 %v1210, %v1627
        %v1723 = vmul.f32 %v1211, %v1637
        %v1724 = vmul.f32 %v1212, %v1647
        %v1725 = vmul.f32 %v1213, %v1657
        %v1726 = vmul.f32 %v1214, %v1667
        %v1727 = vmul.f32 %v1215, %v1677
        %v1728 = vmul.f32 %v1216, %v1687
        %v1729 = vmul.f32 %v1217, %v1697
        %v1730 = vld [vmem:[%s5] sm:$0x1]
        %v1732 = vperm.slane %v1730, 0
        %v1734 = vmul.f32 %v1698, %v1732
        %v1735 = vmul.f32 %v1699, %v1732
        %v1736 = vmul.f32 %v1700, %v1732
        %v1737 = vmul.f32 %v1701, %v1732
        %v1738 = vmul.f32 %v1702, %v1732
        %v1739 = vmul.f32 %v1703, %v1732
        %v1740 = vmul.f32 %v1704, %v1732
        %v1741 = vmul.f32 %v1705, %v1732
        %v1742 = vmul.f32 %v1706, %v1732
        %v1743 = vmul.f32 %v1707, %v1732
        %v1744 = vmul.f32 %v1708, %v1732
        %v1745 = vmul.f32 %v1709, %v1732
        %v1746 = vmul.f32 %v1710, %v1732
        %v1747 = vmul.f32 %v1711, %v1732
        %v1748 = vmul.f32 %v1712, %v1732
        %v1749 = vmul.f32 %v1713, %v1732
        %v1750 = vmul.f32 %v1714, %v1732
        %v1751 = vmul.f32 %v1715, %v1732
        %v1752 = vmul.f32 %v1716, %v1732
        %v1753 = vmul.f32 %v1717, %v1732
        %v1754 = vmul.f32 %v1718, %v1732
        %v1755 = vmul.f32 %v1719, %v1732
        %v1756 = vmul.f32 %v1720, %v1732
        %v1757 = vmul.f32 %v1721, %v1732
        %v1758 = vmul.f32 %v1722, %v1732
        %v1759 = vmul.f32 %v1723, %v1732
        %v1760 = vmul.f32 %v1724, %v1732
        %v1761 = vmul.f32 %v1725, %v1732
        %v1762 = vmul.f32 %v1726, %v1732
        %v1763 = vmul.f32 %v1727, %v1732
        %v1764 = vmul.f32 %v1728, %v1732
        %v1765 = vmul.f32 %v1729, %v1732
        %v1766 = vld [vmem:[%s6] sm:$0x1]
        %v1768 = vperm.slane %v1766, 0
        %v1770 = vadd.f32 %v1734, %v1768
        %v1771 = vadd.f32 %v1735, %v1768
        %v1772 = vadd.f32 %v1736, %v1768
        %v1773 = vadd.f32 %v1737, %v1768
        %v1774 = vadd.f32 %v1738, %v1768
        %v1775 = vadd.f32 %v1739, %v1768
        %v1776 = vadd.f32 %v1740, %v1768
        %v1777 = vadd.f32 %v1741, %v1768
        %v1778 = vadd.f32 %v1742, %v1768
        %v1779 = vadd.f32 %v1743, %v1768
        %v1780 = vadd.f32 %v1744, %v1768
        %v1781 = vadd.f32 %v1745, %v1768
        %v1782 = vadd.f32 %v1746, %v1768
        %v1783 = vadd.f32 %v1747, %v1768
        %v1784 = vadd.f32 %v1748, %v1768
        %v1785 = vadd.f32 %v1749, %v1768
        %v1786 = vadd.f32 %v1750, %v1768
        %v1787 = vadd.f32 %v1751, %v1768
        %v1788 = vadd.f32 %v1752, %v1768
        %v1789 = vadd.f32 %v1753, %v1768
        %v1790 = vadd.f32 %v1754, %v1768
        %v1791 = vadd.f32 %v1755, %v1768
        %v1792 = vadd.f32 %v1756, %v1768
        %v1793 = vadd.f32 %v1757, %v1768
        %v1794 = vadd.f32 %v1758, %v1768
        %v1795 = vadd.f32 %v1759, %v1768
        %v1796 = vadd.f32 %v1760, %v1768
        %v1797 = vadd.f32 %v1761, %v1768
        %v1798 = vadd.f32 %v1762, %v1768
        %v1799 = vadd.f32 %v1763, %v1768
        %v1800 = vadd.f32 %v1764, %v1768
        %v1801 = vadd.f32 %v1765, %v1768
        %1802 = vst [vmem:[%s346] sm:$0xff] %v1770
        %1803 = vst [vmem:[%s346 + $0x8] sm:$0xff] %v1771
        %1804 = vst [vmem:[%s346 + $0x10] sm:$0xff] %v1772
        %1805 = vst [vmem:[%s346 + $0x18] sm:$0xff] %v1773
        %1806 = vst [vmem:[%s346 + $0x20] sm:$0xff] %v1774
        %1807 = vst [vmem:[%s346 + $0x28] sm:$0xff] %v1775
        %1808 = vst [vmem:[%s346 + $0x30] sm:$0xff] %v1776
        %1809 = vst [vmem:[%s346 + $0x38] sm:$0xff] %v1777
        %1810 = vst [vmem:[%s346 + $0x40] sm:$0xff] %v1778
        %1811 = vst [vmem:[%s346 + $0x48] sm:$0xff] %v1779
        %1812 = vst [vmem:[%s346 + $0x50] sm:$0xff] %v1780
        %1813 = vst [vmem:[%s346 + $0x58] sm:$0xff] %v1781
        %1814 = vst [vmem:[%s346 + $0x60] sm:$0xff] %v1782
        %1815 = vst [vmem:[%s346 + $0x68] sm:$0xff] %v1783
        %1816 = vst [vmem:[%s346 + $0x70] sm:$0xff] %v1784
        %1817 = vst [vmem:[%s346 + $0x78] sm:$0xff] %v1785
        %1818 = vst [vmem:[%s346 + $0x80] sm:$0xff] %v1786
        %1819 = vst [vmem:[%s346 + $0x88] sm:$0xff] %v1787
        %1820 = vst [vmem:[%s346 + $0x90] sm:$0xff] %v1788
        %1821 = vst [vmem:[%s346 + $0x98] sm:$0xff] %v1789
        %1822 = vst [vmem:[%s346 + $0xa0] sm:$0xff] %v1790
        %1823 = vst [vmem:[%s346 + $0xa8] sm:$0xff] %v1791
        %1824 = vst [vmem:[%s346 + $0xb0] sm:$0xff] %v1792
        %1825 = vst [vmem:[%s346 + $0xb8] sm:$0xff] %v1793
        %1826 = vst [vmem:[%s346 + $0xc0] sm:$0xff] %v1794
        %1827 = vst [vmem:[%s346 + $0xc8] sm:$0xff] %v1795
        %1828 = vst [vmem:[%s346 + $0xd0] sm:$0xff] %v1796
        %1829 = vst [vmem:[%s346 + $0xd8] sm:$0xff] %v1797
        %1830 = vst [vmem:[%s346 + $0xe0] sm:$0xff] %v1798
        %1831 = vst [vmem:[%s346 + $0xe8] sm:$0xff] %v1799
        %1832 = vst [vmem:[%s346 + $0xf0] sm:$0xff] %v1800
        %1833 = vst [vmem:[%s346 + $0xf8] sm:$0xff] %v1801
        %s1834 = sand.u32 %s186, 1
        %s1835 = scalar_lea.sflag [#allocation4], %s1834
        %s1836 = sand.u32 %s186, 1
        %s1837 = smul.addr %s1836, 256
        %s1838 = scalar_lea.vmem [#allocation10], %s1837
        // Predicated region
        $region65: #{tpu_custom_call.1} parent=47 // pred_check
          %p1839 = pneg %p196
        $region66: #{tpu_custom_call.1} parent=47 // pred_check_branch
          %1841 = sbr.rel (%p1839) target = $region68
        $region67: #{tpu_custom_call.1} parent=47 // pred_region
          %s1842 = smul.u32 32, %s26
          %1844 = vsyncadd %s1835, 0
          %s1845 = smul.addr %s1842, 8
          %s1846 = scalar_lea.hbm %s7, %s1845
          %s1847 = sshll.u32 %s1838, 4
          %s1848 = int_to_ptr.vmem [resolvable:$true] %s1847
          %s1849 = sshll.u32 %s1846, 4
          %s1850 = int_to_ptr.hbm [resolvable:$true] %s1849
          %1855 = dma.vmem_to_hbm [thread:$0]  %s1848, 4096, %s1850, %s1835, 128, 128, 8
        $region68: #{tpu_custom_call.1} parent=47 // pred_fallthru
          _
      $region48: #{tpu_custom_call.1} parent=5 // pred_fallthru
        _
      %p1856 = scmp.le.s32.totalorder 2, %s21
      // Predicated region
      $region69: #{tpu_custom_call.1} parent=5 // pred_check
        %p1857 = pneg %p1856
      $region70: #{tpu_custom_call.1} parent=5 // pred_check_branch
        %1859 = sbr.rel (%p1857) target = $region72
      $region71: #{tpu_custom_call.1} parent=5 // pred_region
        %s1860 = ssub.s32 %s21, 2
        // Predicated region
        $region73: #{tpu_custom_call.1} parent=71 // pred_check
          %p1861 = pneg %p202
        $region74: #{tpu_custom_call.1} parent=71 // pred_check_branch
          %1863 = sbr.rel (%p1861) target = $region76
        $region75: #{tpu_custom_call.1} parent=71 // pred_region
          %s1864 = sand.u32 %s187, 1
          %s1865 = scalar_lea.sflag [#allocation4], %s1864
          %s1866 = sand.u32 %s187, 1
          %s1867 = smul.addr %s1866, 256
          %s1868 = scalar_lea.vmem [#allocation10], %s1867
          %1870 = dma.done %s1865, 4096
        $region76: #{tpu_custom_call.1} parent=71 // pred_fallthru
          _
      $region72: #{tpu_custom_call.1} parent=5 // pred_fallthru
        _
    $region6: #{tpu_custom_call.1} parent=1 // loop_footer
      %s25 = sadd.s32 1, %s21
    $region7: #{tpu_custom_call.1} parent=1 // loop_footer_branch
      %20 = sbr.rel target = $region3
    $region8: #{tpu_custom_call.1} parent=1 // loop_exit
      _
    %1871 = vsyncpa [#allocation3], 1
    %s1872 = scalar_lea.sflag [#allocation3], 1
    %1873 = vsyncpa %s1872, 1
    %1874 = vsyncpa [#allocation6], 1
    %1875 = vsyncpa [#allocation9], 1
    %1876 = vsyncpa [#allocation4], 1
    %s1877 = scalar_lea.sflag [#allocation4], 1
    %1878 = vsyncpa %s1877, 1

</llo_original>
